<compile_context>
chip_gen: v6e
topology: v6e:2x2x1
jax: 0.10.0
libtpu: 0.0.40
codegen_flags: <defaults>
</compile_context>

<pallas_src>
import math
from functools import partial

import jax
import jax.numpy as jnp
from jax.experimental import pallas as pl
from jax.experimental.pallas import tpu as pltpu


# ----------------------------------------------------------------------------
# Pallas kernels
# ----------------------------------------------------------------------------
def _linear_kernel(x_ref, w_ref, b_ref, o_ref):
    # x: (tm, K) bf16, w: (K, tn) bf16, b: (1, tn) f32 -> o: (tm, tn)
    o_ref[...] = (
        jnp.dot(x_ref[...], w_ref[...], preferred_element_type=jnp.float32)
        + b_ref[...]
    ).astype(o_ref.dtype)


def pallas_linear(x2d, w, b, out_dtype=jnp.float32):
    """(M,K) @ (K,N) + b, tiled over M and N (K kept resident; d_model is small)."""
    M, K = x2d.shape
    N = w.shape[1]
    tm = M if M <= 256 else 256
    tn = N if N <= 512 else 512
    grid = (pl.cdiv(M, tm), pl.cdiv(N, tn))
    return pl.pallas_call(
        _linear_kernel,
        grid=grid,
        in_specs=[
            pl.BlockSpec((tm, K), lambda i, j: (i, 0)),
            pl.BlockSpec((K, tn), lambda i, j: (0, j)),
            pl.BlockSpec((1, tn), lambda i, j: (0, j)),
        ],
        out_specs=pl.BlockSpec((tm, tn), lambda i, j: (i, j)),
        out_shape=jax.ShapeDtypeStruct((M, N), out_dtype),
        compiler_params=pltpu.CompilerParams(
            dimension_semantics=("parallel", "parallel")
        ),
    )(x2d, w, b)


def _ffn_kernel(x_ref, w1_ref, b1_ref, w2_ref, b2_ref, o_ref):
    # fused: relu(x @ W1 + b1) @ W2 + b2   (bf16 matmuls, f32 accumulation)
    h = jnp.dot(x_ref[...], w1_ref[...], preferred_element_type=jnp.float32) + b1_ref[...]
    h = jnp.maximum(h, 0.0).astype(jnp.bfloat16)
    o_ref[...] = (
        jnp.dot(h, w2_ref[...], preferred_element_type=jnp.float32) + b2_ref[...]
    ).astype(o_ref.dtype)


def pallas_ffn(x, p):
    """x: (B, S, D) bf16 -> (B, S, D) bf16, tiled over B*S rows."""
    B, S, D = x.shape
    M = B * S
    F = p["w1"].shape[1]
    x2 = x.reshape(M, D)
    tm = M if M <= 512 else 512
    # TODO(synk): on v7x (64 MiB VMEM) tile d_ff with a K-accumulator if W1/W2
    #             no longer fit resident; not needed at these model sizes.
    y = pl.pallas_call(
        _ffn_kernel,
        grid=(pl.cdiv(M, tm),),
        in_specs=[
            pl.BlockSpec((tm, D), lambda i: (i, 0)),
            pl.BlockSpec((D, F), lambda i: (0, 0)),
            pl.BlockSpec((1, F), lambda i: (0, 0)),
            pl.BlockSpec((F, D), lambda i: (0, 0)),
            pl.BlockSpec((1, D), lambda i: (0, 0)),
        ],
        out_specs=pl.BlockSpec((tm, D), lambda i: (i, 0)),
        out_shape=jax.ShapeDtypeStruct((M, D), jnp.bfloat16),
        compiler_params=pltpu.CompilerParams(dimension_semantics=("parallel",)),
    )(x2, p["w1"], p["b1"], p["w2"], p["b2"])
    return y.reshape(B, S, D)


def _mha_kernel(scale, num_heads,
                q_ref, kv_ref, wq_ref, bq_ref, wkv_ref, bkv_ref,
                wo_ref, bo_ref, m_ref, o_ref, attn_ref):
    """One batch element: fused Q / K|V projections, all heads, folded O-proj.

    q_ref : (Sq, D) bf16    kv_ref : (Sk, D) bf16
    wq    : (D, D)          wkv    : (D, 2D)      wo : (D, D)   (all bf16)
    m_ref : (Sq, Sk) f32 (1 = keep, 0 = mask)
    o_ref : (Sq, D) bf16    attn_ref : (H, Sq, Sk) f32
    """
    Sq, D = q_ref.shape
    Sk = kv_ref.shape[0]
    dk = D // num_heads

    # Fused projections (one MXU pass each); fold 1/sqrt(dk) into q.
    q = (jnp.dot(q_ref[...], wq_ref[...], preferred_element_type=jnp.float32)
         + bq_ref[...]) * scale
    kv = (jnp.dot(kv_ref[...], wkv_ref[...], preferred_element_type=jnp.float32)
          + bkv_ref[...])
    k = kv[:, :D]
    v = kv[:, D:]

    masked = m_ref[...] == 0.0  # (Sq, Sk)

    out_acc = jnp.zeros((Sq, D), jnp.float32)
    for h in range(num_heads):  # static unroll; all heads share one launch
        lo = h * dk
        qh = q[:, lo:lo + dk].astype(jnp.bfloat16)
        kh = k[:, lo:lo + dk].astype(jnp.bfloat16)
        vh = v[:, lo:lo + dk].astype(jnp.bfloat16)

        # scores = qh @ kh^T without an explicit transpose (contraction dims).
        s = jax.lax.dot_general(qh, kh, (((1,), (1,)), ((), ())),
                                preferred_element_type=jnp.float32)
        s = jnp.where(masked, -1e9, s)
        s = s - jnp.max(s, axis=-1, keepdims=True)
        e = jnp.exp(s)
        a = e * pl.reciprocal(jnp.sum(e, axis=-1, keepdims=True), approx=True)
        attn_ref[h, :, :] = a

        ctx = jnp.dot(a.astype(jnp.bfloat16), vh,
                      preferred_element_type=jnp.float32)          # (Sq, dk)
        # Fold output projection: accumulate ctx_h @ Wo[h*dk:(h+1)*dk, :].
        out_acc = out_acc + jnp.dot(ctx.astype(jnp.bfloat16),
                                    wo_ref[lo:lo + dk, :],
                                    preferred_element_type=jnp.float32)

    o_ref[...] = (out_acc + bo_ref[...]).astype(o_ref.dtype)


def pallas_mha(q_in, kv_in, mask_b, p, num_heads):
    """q_in: (B, Sq, D) bf16; kv_in: (B, Sk, D) bf16; mask_b: (B, Sq, Sk) f32."""
    B, Sq, D = q_in.shape
    Sk = kv_in.shape[1]
    dk = D // num_heads
    scale = 1.0 / math.sqrt(dk)
    kernel = partial(_mha_kernel, scale, num_heads)
    out, attn = pl.pallas_call(
        kernel,
        grid=(B,),
        in_specs=[
            pl.BlockSpec((None, Sq, D), lambda b: (b, 0, 0)),
            pl.BlockSpec((None, Sk, D), lambda b: (b, 0, 0)),
            pl.BlockSpec((D, D), lambda b: (0, 0)),
            pl.BlockSpec((1, D), lambda b: (0, 0)),
            pl.BlockSpec((D, 2 * D), lambda b: (0, 0)),
            pl.BlockSpec((1, 2 * D), lambda b: (0, 0)),
            pl.BlockSpec((D, D), lambda b: (0, 0)),
            pl.BlockSpec((1, D), lambda b: (0, 0)),
            pl.BlockSpec((None, Sq, Sk), lambda b: (b, 0, 0)),
        ],
        out_specs=[
            pl.BlockSpec((None, Sq, D), lambda b: (b, 0, 0)),
            pl.BlockSpec((None, num_heads, Sq, Sk), lambda b: (b, 0, 0, 0)),
        ],
        out_shape=(
            jax.ShapeDtypeStruct((B, Sq, D), jnp.bfloat16),
            jax.ShapeDtypeStruct((B, num_heads, Sq, Sk), jnp.float32),
        ),
        compiler_params=pltpu.CompilerParams(dimension_semantics=("parallel",)),
    )(q_in, kv_in, p["wq"], p["bq"], p["wkv"], p["bkv"], p["wo"], p["bo"], mask_b)
    return out, attn


# ----------------------------------------------------------------------------
# Model pieces (glue around the kernels)
# ----------------------------------------------------------------------------
def decoder_layer(p, x, enc_out, la_mask_b, pad_mask_b, num_heads):
    a1, w1 = pallas_mha(x, x, la_mask_b, p["self_attn"], num_heads)
    a2, w2 = pallas_mha(a1, enc_out, pad_mask_b, p["cross_attn"], num_heads)
    out = pallas_ffn(a2, p["ffn"])
    return out, {"self_attention": w1, "encoder_decoder_attention": w2}


def sinusoidal_positional_encoding(max_len, d_model):
    pos = jnp.arange(max_len, dtype=jnp.float32)[:, None]
    i = jnp.arange(d_model, dtype=jnp.float32)[None, :]
    angle = pos / jnp.power(10000.0, (2.0 * jnp.floor(i / 2.0)) / d_model)
    pe = jnp.where(jnp.mod(i, 2) == 0, jnp.sin(angle), jnp.cos(angle))
    return pe  # (max_len, d_model)


def embeddings(params, tokens, d_model):
    # token-embedding gather stays in plain JAX (no matmul hot path here)
    x = jnp.take(params["emb_table"], tokens, axis=0) * math.sqrt(d_model)
    x = x + params["pos_enc"][: tokens.shape[1]][None, :, :]
    return x  # dropout = identity (inference)


def _expand_mask(mask, B, Sq, Sk):
    if mask is None:
        return jnp.ones((B, Sq, Sk), jnp.float32)
    # (B, 1, Sq, Sk) or (B, 1, 1, Sk) -> (B, Sq, Sk), 1 = keep / 0 = mask
    return jnp.broadcast_to(mask[:, 0].astype(jnp.float32), (B, Sq, Sk))


def decoder_forward(params, tokens, enc_out, look_ahead_mask, padding_mask,
                    num_heads, d_model):
    B, S = tokens.shape
    Se = enc_out.shape[1]
    x = embeddings(params, tokens, d_model).astype(jnp.bfloat16)
    enc_bf16 = enc_out.astype(jnp.bfloat16)
    la_mask_b = _expand_mask(look_ahead_mask, B, S, S)
    pad_mask_b = _expand_mask(padding_mask, B, S, Se)

    attention_weights = {}
    for i, layer_p in enumerate(params["layers"]):
        x, layer_attn = decoder_layer(layer_p, x, enc_bf16,
                                      la_mask_b, pad_mask_b, num_heads)
        for name, w in layer_attn.items():
            attention_weights[f"decoder_layer{i + 1}_{name}"] = w

    logits = pallas_linear(x.reshape(B * S, d_model),
                           params["final_w"], params["final_b"])
    logits = logits.reshape(B, S, -1)
    return logits, attention_weights


# ----------------------------------------------------------------------------
# Deterministic parameter init (weights bf16 for the MXU, biases f32)
# ----------------------------------------------------------------------------
def init_params(key, vocab_size, d_model, num_heads, d_ff, num_layers,
                max_seq_length):
    def dense(k, din, dout):
        w = (jax.random.normal(k, (din, dout), jnp.float32) * 0.02).astype(jnp.bfloat16)
        b = jnp.zeros((1, dout), jnp.float32)
        return w, b

    keys = jax.random.split(key, 2 + num_layers)
    params = {
        "emb_table": jax.random.normal(keys[0], (vocab_size, d_model),
                                       jnp.float32) * 0.02,
        "pos_enc": sinusoidal_positional_encoding(max_seq_length, d_model),
        "layers": [],
    }
    params["final_w"], params["final_b"] = dense(keys[1], d_model, vocab_size)

    for li in range(num_layers):
        lkeys = jax.random.split(keys[2 + li], 10)

        def mha(ks):
            wq, bq = dense(ks[0], d_model, d_model)
            wk, bk = dense(ks[1], d_model, d_model)
            wv, bv = dense(ks[2], d_model, d_model)
            wo, bo = dense(ks[3], d_model, d_model)
            return dict(wq=wq, bq=bq,
                        wkv=jnp.concatenate([wk, wv], axis=1),   # fused K|V proj
                        bkv=jnp.concatenate([bk, bv], axis=1),
                        wo=wo, bo=bo)

        w1, b1 = dense(lkeys[8], d_model, d_ff)
        w2, b2 = dense(lkeys[9], d_ff, d_model)
        params["layers"].append({
            "self_attn": mha(lkeys[0:4]),
            "cross_attn": mha(lkeys[4:8]),
            "ffn": dict(w1=w1, b1=b1, w2=w2, b2=b2),
        })
    return params


# ----------------------------------------------------------------------------
# Main
# ----------------------------------------------------------------------------
if __name__ == "__main__":
    # Small, self-consistent configuration
    vocab_size = 50
    d_model = 32
    num_heads = 4
    d_ff = 64
    num_layers = 2
    max_seq_length = 16
    batch = 2
    seq_len = 8          # decoder sequence length
    input_seq_len = 8    # encoder sequence length

    key = jax.random.PRNGKey(0)
    kp, kt, ke = jax.random.split(key, 3)

    params = init_params(kp, vocab_size, d_model, num_heads, d_ff,
                         num_layers, max_seq_length)

    tokens = jax.random.randint(kt, (batch, seq_len), 0, vocab_size)
    encoder_output = jax.random.normal(ke, (batch, input_seq_len, d_model),
                                       jnp.float32)

    # look-ahead (causal) mask: (B, 1, S, S), 1 = attend, 0 = masked
    look_ahead_mask = jnp.tril(jnp.ones((seq_len, seq_len), jnp.float32))
    look_ahead_mask = jnp.broadcast_to(look_ahead_mask[None, None],
                                       (batch, 1, seq_len, seq_len))
    # padding mask: (B, 1, 1, input_seq_len), all valid here
    padding_mask = jnp.ones((batch, 1, 1, input_seq_len), jnp.float32)

    fwd = jax.jit(partial(decoder_forward, num_heads=num_heads, d_model=d_model))
    logits, attn_weights = fwd(params, tokens, encoder_output,
                               look_ahead_mask, padding_mask)

    logits = jax.block_until_ready(logits)
    for v in attn_weights.values():
        jax.block_until_ready(v)

    assert logits.shape == (batch, seq_len, vocab_size)
    assert attn_weights["decoder_layer1_self_attention"].shape == (
        batch, num_heads, seq_len, seq_len)
    assert attn_weights["decoder_layer2_encoder_decoder_attention"].shape == (
        batch, num_heads, seq_len, input_seq_len)

    print("KERNEL_OK")
</pallas_src>

<mosaic_0001>
module attributes {stable_mosaic.version = 11 : i64} {
  func.func @_ffn_kernel(%arg0: i32, %arg1: memref<16x32xbf16, #tpu.memory_space<vmem>>, %arg2: memref<32x64xbf16, #tpu.memory_space<vmem>>, %arg3: memref<1x64xf32, #tpu.memory_space<vmem>>, %arg4: memref<64x32xbf16, #tpu.memory_space<vmem>>, %arg5: memref<1x32xf32, #tpu.memory_space<vmem>>, %arg6: memref<16x32xbf16, #tpu.memory_space<vmem>>) attributes {dimension_semantics = [#tpu.dimension_semantics<parallel>], iteration_bounds = array<i64: 1>, scalar_prefetch = 0 : i64, scratch_operands = 0 : i64, tpu.core_type = #tpu.core_type<tc>, window_params = [{transform_indices = @transform_0, window_bounds = array<i64: 16, 32>}, {pipeline_mode = #tpu.pipeline_mode<synchronous>, transform_indices = @transform_1, window_bounds = array<i64: 32, 64>}, {pipeline_mode = #tpu.pipeline_mode<synchronous>, transform_indices = @transform_2, window_bounds = array<i64: 1, 64>}, {pipeline_mode = #tpu.pipeline_mode<synchronous>, transform_indices = @transform_3, window_bounds = array<i64: 64, 32>}, {pipeline_mode = #tpu.pipeline_mode<synchronous>, transform_indices = @transform_4, window_bounds = array<i64: 1, 32>}, {transform_indices = @transform_5, window_bounds = array<i64: 16, 32>}]} {
    %c0 = arith.constant 0 : index
    %c0_0 = arith.constant 0 : index
    %0 = vector.load %arg1[%c0, %c0_0] : memref<16x32xbf16, #tpu.memory_space<vmem>>, vector<16x32xbf16>
    %c0_1 = arith.constant 0 : index
    %c0_2 = arith.constant 0 : index
    %1 = vector.load %arg2[%c0_1, %c0_2] : memref<32x64xbf16, #tpu.memory_space<vmem>>, vector<32x64xbf16>
    %cst = arith.constant dense<0.000000e+00> : vector<16x64xf32>
    %2 = tpu.matmul %0, %1, %cst {dimension_numbers = #tpu.dot_dimension_numbers<[1], [0], [0], [1], [0, 0, 1, 1], [], []>} : vector<16x32xbf16>, vector<32x64xbf16>, vector<16x64xf32> -> vector<16x64xf32>
    %c0_3 = arith.constant 0 : index
    %c0_4 = arith.constant 0 : index
    %3 = vector.load %arg3[%c0_3, %c0_4] : memref<1x64xf32, #tpu.memory_space<vmem>>, vector<1x64xf32>
    %4 = vector.broadcast %3 : vector<1x64xf32> to vector<16x64xf32>
    %5 = arith.addf %2, %4 : vector<16x64xf32>
    %cst_5 = arith.constant 0.000000e+00 : f32
    %6 = vector.broadcast %cst_5 : f32 to vector<16x64xf32>
    %7 = arith.maximumf %5, %6 : vector<16x64xf32>
    %8 = arith.truncf %7 : vector<16x64xf32> to vector<16x64xbf16>
    %c0_6 = arith.constant 0 : index
    %c0_7 = arith.constant 0 : index
    %9 = vector.load %arg4[%c0_6, %c0_7] : memref<64x32xbf16, #tpu.memory_space<vmem>>, vector<64x32xbf16>
    %cst_8 = arith.constant dense<0.000000e+00> : vector<16x32xf32>
    %10 = tpu.matmul %8, %9, %cst_8 {dimension_numbers = #tpu.dot_dimension_numbers<[1], [0], [0], [1], [0, 0, 1, 1], [], []>} : vector<16x64xbf16>, vector<64x32xbf16>, vector<16x32xf32> -> vector<16x32xf32>
    %c0_9 = arith.constant 0 : index
    %c0_10 = arith.constant 0 : index
    %11 = vector.load %arg5[%c0_9, %c0_10] : memref<1x32xf32, #tpu.memory_space<vmem>>, vector<1x32xf32>
    %12 = vector.broadcast %11 : vector<1x32xf32> to vector<16x32xf32>
    %13 = arith.addf %10, %12 : vector<16x32xf32>
    %14 = arith.truncf %13 : vector<16x32xf32> to vector<16x32xbf16>
    %c0_11 = arith.constant 0 : index
    %c0_12 = arith.constant 0 : index
    %15 = vector.load %arg6[%c0_11, %c0_12] : memref<16x32xbf16, #tpu.memory_space<vmem>>, vector<16x32xbf16>
    tpu.vector_store %arg6[%c0_11, %c0_12], %14 {strides = array<i32>} : memref<16x32xbf16, #tpu.memory_space<vmem>>, vector<16x32xbf16>,
    return
  }
  func.func @transform_0(%arg0: i32) -> (i32, i32) {
    %c0_i32 = arith.constant 0 : i32
    %c0_i32_0 = arith.constant 0 : i32
    return %arg0, %c0_i32 : i32, i32
  }
  func.func @transform_1(%arg0: i32) -> (i32, i32) {
    %c0_i32 = arith.constant 0 : i32
    %c0_i32_0 = arith.constant 0 : i32
    %c0_i32_1 = arith.constant 0 : i32
    return %c0_i32, %c0_i32_0 : i32, i32
  }
  func.func @transform_2(%arg0: i32) -> (i32, i32) {
    %c0_i32 = arith.constant 0 : i32
    %c0_i32_0 = arith.constant 0 : i32
    %c0_i32_1 = arith.constant 0 : i32
    return %c0_i32, %c0_i32_0 : i32, i32
  }
  func.func @transform_3(%arg0: i32) -> (i32, i32) {
    %c0_i32 = arith.constant 0 : i32
    %c0_i32_0 = arith.constant 0 : i32
    %c0_i32_1 = arith.constant 0 : i32
    return %c0_i32, %c0_i32_0 : i32, i32
  }
  func.func @transform_4(%arg0: i32) -> (i32, i32) {
    %c0_i32 = arith.constant 0 : i32
    %c0_i32_0 = arith.constant 0 : i32
    %c0_i32_1 = arith.constant 0 : i32
    return %c0_i32, %c0_i32_0 : i32, i32
  }
  func.func @transform_5(%arg0: i32) -> (i32, i32) {
    %c0_i32 = arith.constant 0 : i32
    %c0_i32_0 = arith.constant 0 : i32
    return %arg0, %c0_i32 : i32, i32
  }
}

module attributes {stable_mosaic.version = 11 : i64} {
  func.func @_mha_kernel(%arg0: i32, %arg1: memref<1x8x32xbf16, #tpu.memory_space<vmem>>, %arg2: memref<1x8x32xbf16, #tpu.memory_space<vmem>>, %arg3: memref<32x32xbf16, #tpu.memory_space<vmem>>, %arg4: memref<1x32xf32, #tpu.memory_space<vmem>>, %arg5: memref<32x64xbf16, #tpu.memory_space<vmem>>, %arg6: memref<1x64xf32, #tpu.memory_space<vmem>>, %arg7: memref<32x32xbf16, #tpu.memory_space<vmem>>, %arg8: memref<1x32xf32, #tpu.memory_space<vmem>>, %arg9: memref<1x8x8xf32, #tpu.memory_space<vmem>>, %arg10: memref<1x8x32xbf16, #tpu.memory_space<vmem>>, %arg11: memref<1x4x8x8xf32, #tpu.memory_space<vmem>>) attributes {dimension_semantics = [#tpu.dimension_semantics<parallel>], iteration_bounds = array<i64: 2>, scalar_prefetch = 0 : i64, scratch_operands = 0 : i64, tpu.core_type = #tpu.core_type<tc>, window_params = [{transform_indices = @transform_0, window_bounds = array<i64: 1, 8, 32>}, {transform_indices = @transform_1, window_bounds = array<i64: 1, 8, 32>}, {pipeline_mode = #tpu.pipeline_mode<synchronous>, transform_indices = @transform_2, window_bounds = array<i64: 32, 32>}, {pipeline_mode = #tpu.pipeline_mode<synchronous>, transform_indices = @transform_3, window_bounds = array<i64: 1, 32>}, {pipeline_mode = #tpu.pipeline_mode<synchronous>, transform_indices = @transform_4, window_bounds = array<i64: 32, 64>}, {pipeline_mode = #tpu.pipeline_mode<synchronous>, transform_indices = @transform_5, window_bounds = array<i64: 1, 64>}, {pipeline_mode = #tpu.pipeline_mode<synchronous>, transform_indices = @transform_6, window_bounds = array<i64: 32, 32>}, {pipeline_mode = #tpu.pipeline_mode<synchronous>, transform_indices = @transform_7, window_bounds = array<i64: 1, 32>}, {transform_indices = @transform_8, window_bounds = array<i64: 1, 8, 8>}, {transform_indices = @transform_9, window_bounds = array<i64: 1, 8, 32>}, {transform_indices = @transform_10, window_bounds = array<i64: 1, 4, 8, 8>}]} {
    %c0 = arith.constant 0 : index
    %c0_0 = arith.constant 0 : index
    %c0_1 = arith.constant 0 : index
    %0 = vector.load %arg1[%c0, %c0_0, %c0_1] : memref<1x8x32xbf16, #tpu.memory_space<vmem>>, vector<1x8x32xbf16>
    %1 = vector.shape_cast %0 : vector<1x8x32xbf16> to vector<8x32xbf16>
    %c0_2 = arith.constant 0 : index
    %c0_3 = arith.constant 0 : index
    %2 = vector.load %arg3[%c0_2, %c0_3] : memref<32x32xbf16, #tpu.memory_space<vmem>>, vector<32x32xbf16>
    %cst = arith.constant dense<0.000000e+00> : vector<8x32xf32>
    %3 = tpu.matmul %1, %2, %cst {dimension_numbers = #tpu.dot_dimension_numbers<[1], [0], [0], [1], [0, 0, 1, 1], [], []>} : vector<8x32xbf16>, vector<32x32xbf16>, vector<8x32xf32> -> vector<8x32xf32>
    %c0_4 = arith.constant 0 : index
    %c0_5 = arith.constant 0 : index
    %4 = vector.load %arg4[%c0_4, %c0_5] : memref<1x32xf32, #tpu.memory_space<vmem>>, vector<1x32xf32>
    %5 = vector.broadcast %4 : vector<1x32xf32> to vector<8x32xf32>
    %6 = arith.addf %3, %5 : vector<8x32xf32>
    %cst_6 = arith.constant 0.353553385 : f32
    %7 = vector.broadcast %cst_6 : f32 to vector<8x32xf32>
    %8 = arith.mulf %6, %7 : vector<8x32xf32>
    %c0_7 = arith.constant 0 : index
    %c0_8 = arith.constant 0 : index
    %c0_9 = arith.constant 0 : index
    %9 = vector.load %arg2[%c0_7, %c0_8, %c0_9] : memref<1x8x32xbf16, #tpu.memory_space<vmem>>, vector<1x8x32xbf16>
    %10 = vector.shape_cast %9 : vector<1x8x32xbf16> to vector<8x32xbf16>
    %c0_10 = arith.constant 0 : index
    %c0_11 = arith.constant 0 : index
    %11 = vector.load %arg5[%c0_10, %c0_11] : memref<32x64xbf16, #tpu.memory_space<vmem>>, vector<32x64xbf16>
    %cst_12 = arith.constant dense<0.000000e+00> : vector<8x64xf32>
    %12 = tpu.matmul %10, %11, %cst_12 {dimension_numbers = #tpu.dot_dimension_numbers<[1], [0], [0], [1], [0, 0, 1, 1], [], []>} : vector<8x32xbf16>, vector<32x64xbf16>, vector<8x64xf32> -> vector<8x64xf32>
    %c0_13 = arith.constant 0 : index
    %c0_14 = arith.constant 0 : index
    %13 = vector.load %arg6[%c0_13, %c0_14] : memref<1x64xf32, #tpu.memory_space<vmem>>, vector<1x64xf32>
    %14 = vector.broadcast %13 : vector<1x64xf32> to vector<8x64xf32>
    %15 = arith.addf %12, %14 : vector<8x64xf32>
    %16 = vector.extract_strided_slice %15 {offsets = [0, 0], sizes = [8, 32], strides = [1, 1]} : vector<8x64xf32> to vector<8x32xf32>
    %17 = vector.extract_strided_slice %15 {offsets = [0, 32], sizes = [8, 32], strides = [1, 1]} : vector<8x64xf32> to vector<8x32xf32>
    %c0_15 = arith.constant 0 : index
    %c0_16 = arith.constant 0 : index
    %c0_17 = arith.constant 0 : index
    %18 = vector.load %arg9[%c0_15, %c0_16, %c0_17] : memref<1x8x8xf32, #tpu.memory_space<vmem>>, vector<1x8x8xf32>
    %19 = vector.shape_cast %18 : vector<1x8x8xf32> to vector<8x8xf32>
    %cst_18 = arith.constant 0.000000e+00 : f32
    %20 = vector.broadcast %cst_18 : f32 to vector<8x8xf32>
    %21 = arith.cmpf oeq, %19, %20 : vector<8x8xf32>
    %cst_19 = arith.constant 0.000000e+00 : f32
    %22 = vector.broadcast %cst_19 : f32 to vector<8x32xf32>
    %23 = vector.extract_strided_slice %8 {offsets = [0, 0], sizes = [8, 8], strides = [1, 1]} : vector<8x32xf32> to vector<8x8xf32>
    %24 = arith.truncf %23 : vector<8x8xf32> to vector<8x8xbf16>
    %25 = vector.extract_strided_slice %16 {offsets = [0, 0], sizes = [8, 8], strides = [1, 1]} : vector<8x32xf32> to vector<8x8xf32>
    %26 = arith.truncf %25 : vector<8x8xf32> to vector<8x8xbf16>
    %27 = vector.extract_strided_slice %17 {offsets = [0, 0], sizes = [8, 8], strides = [1, 1]} : vector<8x32xf32> to vector<8x8xf32>
    %28 = arith.truncf %27 : vector<8x8xf32> to vector<8x8xbf16>
    %cst_20 = arith.constant dense<0.000000e+00> : vector<8x8xf32>
    %29 = tpu.matmul %24, %26, %cst_20 {dimension_numbers = #tpu.dot_dimension_numbers<[1], [1], [0], [0], [0, 0, 1, 0], [], []>} : vector<8x8xbf16>, vector<8x8xbf16>, vector<8x8xf32> -> vector<8x8xf32>
    %cst_21 = arith.constant -1.000000e+09 : f32
    %30 = vector.broadcast %cst_21 : f32 to vector<8x8xf32>
    %31 = arith.select %21, %30, %29 : vector<8x8xi1>, vector<8x8xf32>
    %cst_22 = arith.constant dense<0xFF800000> : vector<8xf32>
    %32 = vector.multi_reduction <maximumf>, %31, %cst_22 [1] : vector<8x8xf32> to vector<8xf32>
    %33 = vector.shape_cast %32 : vector<8xf32> to vector<8x1xf32>
    %34 = vector.broadcast %33 : vector<8x1xf32> to vector<8x8xf32>
    %35 = arith.subf %31, %34 : vector<8x8xf32>
    %36 = math.exp %35 : vector<8x8xf32>
    %cst_23 = arith.constant dense<0.000000e+00> : vector<8xf32>
    %37 = vector.multi_reduction <add>, %36, %cst_23 [1] : vector<8x8xf32> to vector<8xf32>
    %38 = vector.shape_cast %37 : vector<8xf32> to vector<8x1xf32>
    %39 = tpu.reciprocal %38 {approx = true} : vector<8x1xf32> -> vector<8x1xf32>
    %40 = vector.broadcast %39 : vector<8x1xf32> to vector<8x8xf32>
    %41 = arith.mulf %36, %40 : vector<8x8xf32>
    %c0_24 = arith.constant 0 : index
    %c0_25 = arith.constant 0 : index
    %c0_26 = arith.constant 0 : index
    %c0_27 = arith.constant 0 : index
    %42 = vector.load %arg11[%c0_24, %c0_25, %c0_26, %c0_27] : memref<1x4x8x8xf32, #tpu.memory_space<vmem>>, vector<1x1x8x8xf32>
    %43 = vector.shape_cast %42 : vector<1x1x8x8xf32> to vector<8x8xf32>
    %44 = vector.shape_cast %41 : vector<8x8xf32> to vector<1x1x8x8xf32>
    tpu.vector_store %arg11[%c0_24, %c0_25, %c0_26, %c0_27], %44 {strides = array<i32>} : memref<1x4x8x8xf32, #tpu.memory_space<vmem>>, vector<1x1x8x8xf32>,
    %45 = arith.truncf %41 : vector<8x8xf32> to vector<8x8xbf16>
    %cst_28 = arith.constant dense<0.000000e+00> : vector<8x8xf32>
    %46 = tpu.matmul %45, %28, %cst_28 {dimension_numbers = #tpu.dot_dimension_numbers<[1], [0], [0], [1], [0, 0, 1, 1], [], []>} : vector<8x8xbf16>, vector<8x8xbf16>, vector<8x8xf32> -> vector<8x8xf32>
    %47 = arith.truncf %46 : vector<8x8xf32> to vector<8x8xbf16>
    %c0_29 = arith.constant 0 : index
    %c0_30 = arith.constant 0 : index
    %48 = vector.load %arg7[%c0_29, %c0_30] : memref<32x32xbf16, #tpu.memory_space<vmem>>, vector<8x32xbf16>
    %cst_31 = arith.constant dense<0.000000e+00> : vector<8x32xf32>
    %49 = tpu.matmul %47, %48, %cst_31 {dimension_numbers = #tpu.dot_dimension_numbers<[1], [0], [0], [1], [0, 0, 1, 1], [], []>} : vector<8x8xbf16>, vector<8x32xbf16>, vector<8x32xf32> -> vector<8x32xf32>
    %50 = arith.addf %22, %49 : vector<8x32xf32>
    %51 = vector.extract_strided_slice %8 {offsets = [0, 8], sizes = [8, 8], strides = [1, 1]} : vector<8x32xf32> to vector<8x8xf32>
    %52 = arith.truncf %51 : vector<8x8xf32> to vector<8x8xbf16>
    %53 = vector.extract_strided_slice %16 {offsets = [0, 8], sizes = [8, 8], strides = [1, 1]} : vector<8x32xf32> to vector<8x8xf32>
    %54 = arith.truncf %53 : vector<8x8xf32> to vector<8x8xbf16>
    %55 = vector.extract_strided_slice %17 {offsets = [0, 8], sizes = [8, 8], strides = [1, 1]} : vector<8x32xf32> to vector<8x8xf32>
    %56 = arith.truncf %55 : vector<8x8xf32> to vector<8x8xbf16>
    %cst_32 = arith.constant dense<0.000000e+00> : vector<8x8xf32>
    %57 = tpu.matmul %52, %54, %cst_32 {dimension_numbers = #tpu.dot_dimension_numbers<[1], [1], [0], [0], [0, 0, 1, 0], [], []>} : vector<8x8xbf16>, vector<8x8xbf16>, vector<8x8xf32> -> vector<8x8xf32>
    %cst_33 = arith.constant -1.000000e+09 : f32
    %58 = vector.broadcast %cst_33 : f32 to vector<8x8xf32>
    %59 = arith.select %21, %58, %57 : vector<8x8xi1>, vector<8x8xf32>
    %cst_34 = arith.constant dense<0xFF800000> : vector<8xf32>
    %60 = vector.multi_reduction <maximumf>, %59, %cst_34 [1] : vector<8x8xf32> to vector<8xf32>
    %61 = vector.shape_cast %60 : vector<8xf32> to vector<8x1xf32>
    %62 = vector.broadcast %61 : vector<8x1xf32> to vector<8x8xf32>
    %63 = arith.subf %59, %62 : vector<8x8xf32>
    %64 = math.exp %63 : vector<8x8xf32>
    %cst_35 = arith.constant dense<0.000000e+00> : vector<8xf32>
    %65 = vector.multi_reduction <add>, %64, %cst_35 [1] : vector<8x8xf32> to vector<8xf32>
    %66 = vector.shape_cast %65 : vector<8xf32> to vector<8x1xf32>
    %67 = tpu.reciprocal %66 {approx = true} : vector<8x1xf32> -> vector<8x1xf32>
    %68 = vector.broadcast %67 : vector<8x1xf32> to vector<8x8xf32>
    %69 = arith.mulf %64, %68 : vector<8x8xf32>
    %c0_36 = arith.constant 0 : index
    %c1 = arith.constant 1 : index
    %c0_37 = arith.constant 0 : index
    %c0_38 = arith.constant 0 : index
    %70 = vector.load %arg11[%c0_36, %c1, %c0_37, %c0_38] : memref<1x4x8x8xf32, #tpu.memory_space<vmem>>, vector<1x1x8x8xf32>
    %71 = vector.shape_cast %70 : vector<1x1x8x8xf32> to vector<8x8xf32>
    %72 = vector.shape_cast %69 : vector<8x8xf32> to vector<1x1x8x8xf32>
    tpu.vector_store %arg11[%c0_36, %c1, %c0_37, %c0_38], %72 {strides = array<i32>} : memref<1x4x8x8xf32, #tpu.memory_space<vmem>>, vector<1x1x8x8xf32>,
    %73 = arith.truncf %69 : vector<8x8xf32> to vector<8x8xbf16>
    %cst_39 = arith.constant dense<0.000000e+00> : vector<8x8xf32>
    %74 = tpu.matmul %73, %56, %cst_39 {dimension_numbers = #tpu.dot_dimension_numbers<[1], [0], [0], [1], [0, 0, 1, 1], [], []>} : vector<8x8xbf16>, vector<8x8xbf16>, vector<8x8xf32> -> vector<8x8xf32>
    %75 = arith.truncf %74 : vector<8x8xf32> to vector<8x8xbf16>
    %c8 = arith.constant 8 : index
    %c0_40 = arith.constant 0 : index
    %76 = vector.load %arg7[%c8, %c0_40] : memref<32x32xbf16, #tpu.memory_space<vmem>>, vector<8x32xbf16>
    %cst_41 = arith.constant dense<0.000000e+00> : vector<8x32xf32>
    %77 = tpu.matmul %75, %76, %cst_41 {dimension_numbers = #tpu.dot_dimension_numbers<[1], [0], [0], [1], [0, 0, 1, 1], [], []>} : vector<8x8xbf16>, vector<8x32xbf16>, vector<8x32xf32> -> vector<8x32xf32>
    %78 = arith.addf %50, %77 : vector<8x32xf32>
    %79 = vector.extract_strided_slice %8 {offsets = [0, 16], sizes = [8, 8], strides = [1, 1]} : vector<8x32xf32> to vector<8x8xf32>
    %80 = arith.truncf %79 : vector<8x8xf32> to vector<8x8xbf16>
    %81 = vector.extract_strided_slice %16 {offsets = [0, 16], sizes = [8, 8], strides = [1, 1]} : vector<8x32xf32> to vector<8x8xf32>
    %82 = arith.truncf %81 : vector<8x8xf32> to vector<8x8xbf16>
    %83 = vector.extract_strided_slice %17 {offsets = [0, 16], sizes = [8, 8], strides = [1, 1]} : vector<8x32xf32> to vector<8x8xf32>
    %84 = arith.truncf %83 : vector<8x8xf32> to vector<8x8xbf16>
    %cst_42 = arith.constant dense<0.000000e+00> : vector<8x8xf32>
    %85 = tpu.matmul %80, %82, %cst_42 {dimension_numbers = #tpu.dot_dimension_numbers<[1], [1], [0], [0], [0, 0, 1, 0], [], []>} : vector<8x8xbf16>, vector<8x8xbf16>, vector<8x8xf32> -> vector<8x8xf32>
    %cst_43 = arith.constant -1.000000e+09 : f32
    %86 = vector.broadcast %cst_43 : f32 to vector<8x8xf32>
    %87 = arith.select %21, %86, %85 : vector<8x8xi1>, vector<8x8xf32>
    %cst_44 = arith.constant dense<0xFF800000> : vector<8xf32>
    %88 = vector.multi_reduction <maximumf>, %87, %cst_44 [1] : vector<8x8xf32> to vector<8xf32>
    %89 = vector.shape_cast %88 : vector<8xf32> to vector<8x1xf32>
    %90 = vector.broadcast %89 : vector<8x1xf32> to vector<8x8xf32>
    %91 = arith.subf %87, %90 : vector<8x8xf32>
    %92 = math.exp %91 : vector<8x8xf32>
    %cst_45 = arith.constant dense<0.000000e+00> : vector<8xf32>
    %93 = vector.multi_reduction <add>, %92, %cst_45 [1] : vector<8x8xf32> to vector<8xf32>
    %94 = vector.shape_cast %93 : vector<8xf32> to vector<8x1xf32>
    %95 = tpu.reciprocal %94 {approx = true} : vector<8x1xf32> -> vector<8x1xf32>
    %96 = vector.broadcast %95 : vector<8x1xf32> to vector<8x8xf32>
    %97 = arith.mulf %92, %96 : vector<8x8xf32>
    %c0_46 = arith.constant 0 : index
    %c2 = arith.constant 2 : index
    %c0_47 = arith.constant 0 : index
    %c0_48 = arith.constant 0 : index
    %98 = vector.load %arg11[%c0_46, %c2, %c0_47, %c0_48] : memref<1x4x8x8xf32, #tpu.memory_space<vmem>>, vector<1x1x8x8xf32>
    %99 = vector.shape_cast %98 : vector<1x1x8x8xf32> to vector<8x8xf32>
    %100 = vector.shape_cast %97 : vector<8x8xf32> to vector<1x1x8x8xf32>
    tpu.vector_store %arg11[%c0_46, %c2, %c0_47, %c0_48], %100 {strides = array<i32>} : memref<1x4x8x8xf32, #tpu.memory_space<vmem>>, vector<1x1x8x8xf32>,
    %101 = arith.truncf %97 : vector<8x8xf32> to vector<8x8xbf16>
    %cst_49 = arith.constant dense<0.000000e+00> : vector<8x8xf32>
    %102 = tpu.matmul %101, %84, %cst_49 {dimension_numbers = #tpu.dot_dimension_numbers<[1], [0], [0], [1], [0, 0, 1, 1], [], []>} : vector<8x8xbf16>, vector<8x8xbf16>, vector<8x8xf32> -> vector<8x8xf32>
    %103 = arith.truncf %102 : vector<8x8xf32> to vector<8x8xbf16>
    %c16 = arith.constant 16 : index
    %c0_50 = arith.constant 0 : index
    %104 = vector.load %arg7[%c16, %c0_50] : memref<32x32xbf16, #tpu.memory_space<vmem>>, vector<8x32xbf16>
    %cst_51 = arith.constant dense<0.000000e+00> : vector<8x32xf32>
    %105 = tpu.matmul %103, %104, %cst_51 {dimension_numbers = #tpu.dot_dimension_numbers<[1], [0], [0], [1], [0, 0, 1, 1], [], []>} : vector<8x8xbf16>, vector<8x32xbf16>, vector<8x32xf32> -> vector<8x32xf32>
    %106 = arith.addf %78, %105 : vector<8x32xf32>
    %107 = vector.extract_strided_slice %8 {offsets = [0, 24], sizes = [8, 8], strides = [1, 1]} : vector<8x32xf32> to vector<8x8xf32>
    %108 = arith.truncf %107 : vector<8x8xf32> to vector<8x8xbf16>
    %109 = vector.extract_strided_slice %16 {offsets = [0, 24], sizes = [8, 8], strides = [1, 1]} : vector<8x32xf32> to vector<8x8xf32>
    %110 = arith.truncf %109 : vector<8x8xf32> to vector<8x8xbf16>
    %111 = vector.extract_strided_slice %17 {offsets = [0, 24], sizes = [8, 8], strides = [1, 1]} : vector<8x32xf32> to vector<8x8xf32>
    %112 = arith.truncf %111 : vector<8x8xf32> to vector<8x8xbf16>
    %cst_52 = arith.constant dense<0.000000e+00> : vector<8x8xf32>
    %113 = tpu.matmul %108, %110, %cst_52 {dimension_numbers = #tpu.dot_dimension_numbers<[1], [1], [0], [0], [0, 0, 1, 0], [], []>} : vector<8x8xbf16>, vector<8x8xbf16>, vector<8x8xf32> -> vector<8x8xf32>
    %cst_53 = arith.constant -1.000000e+09 : f32
    %114 = vector.broadcast %cst_53 : f32 to vector<8x8xf32>
    %115 = arith.select %21, %114, %113 : vector<8x8xi1>, vector<8x8xf32>
    %cst_54 = arith.constant dense<0xFF800000> : vector<8xf32>
    %116 = vector.multi_reduction <maximumf>, %115, %cst_54 [1] : vector<8x8xf32> to vector<8xf32>
    %117 = vector.shape_cast %116 : vector<8xf32> to vector<8x1xf32>
    %118 = vector.broadcast %117 : vector<8x1xf32> to vector<8x8xf32>
    %119 = arith.subf %115, %118 : vector<8x8xf32>
    %120 = math.exp %119 : vector<8x8xf32>
    %cst_55 = arith.constant dense<0.000000e+00> : vector<8xf32>
    %121 = vector.multi_reduction <add>, %120, %cst_55 [1] : vector<8x8xf32> to vector<8xf32>
    %122 = vector.shape_cast %121 : vector<8xf32> to vector<8x1xf32>
    %123 = tpu.reciprocal %122 {approx = true} : vector<8x1xf32> -> vector<8x1xf32>
    %124 = vector.broadcast %123 : vector<8x1xf32> to vector<8x8xf32>
    %125 = arith.mulf %120, %124 : vector<8x8xf32>
    %c0_56 = arith.constant 0 : index
    %c3 = arith.constant 3 : index
    %c0_57 = arith.constant 0 : index
    %c0_58 = arith.constant 0 : index
    %126 = vector.load %arg11[%c0_56, %c3, %c0_57, %c0_58] : memref<1x4x8x8xf32, #tpu.memory_space<vmem>>, vector<1x1x8x8xf32>
    %127 = vector.shape_cast %126 : vector<1x1x8x8xf32> to vector<8x8xf32>
    %128 = vector.shape_cast %125 : vector<8x8xf32> to vector<1x1x8x8xf32>
    tpu.vector_store %arg11[%c0_56, %c3, %c0_57, %c0_58], %128 {strides = array<i32>} : memref<1x4x8x8xf32, #tpu.memory_space<vmem>>, vector<1x1x8x8xf32>,
    %129 = arith.truncf %125 : vector<8x8xf32> to vector<8x8xbf16>
    %cst_59 = arith.constant dense<0.000000e+00> : vector<8x8xf32>
    %130 = tpu.matmul %129, %112, %cst_59 {dimension_numbers = #tpu.dot_dimension_numbers<[1], [0], [0], [1], [0, 0, 1, 1], [], []>} : vector<8x8xbf16>, vector<8x8xbf16>, vector<8x8xf32> -> vector<8x8xf32>
    %131 = arith.truncf %130 : vector<8x8xf32> to vector<8x8xbf16>
    %c24 = arith.constant 24 : index
    %c0_60 = arith.constant 0 : index
    %132 = vector.load %arg7[%c24, %c0_60] : memref<32x32xbf16, #tpu.memory_space<vmem>>, vector<8x32xbf16>
    %cst_61 = arith.constant dense<0.000000e+00> : vector<8x32xf32>
    %133 = tpu.matmul %131, %132, %cst_61 {dimension_numbers = #tpu.dot_dimension_numbers<[1], [0], [0], [1], [0, 0, 1, 1], [], []>} : vector<8x8xbf16>, vector<8x32xbf16>, vector<8x32xf32> -> vector<8x32xf32>
    %134 = arith.addf %106, %133 : vector<8x32xf32>
    %c0_62 = arith.constant 0 : index
    %c0_63 = arith.constant 0 : index
    %135 = vector.load %arg8[%c0_62, %c0_63] : memref<1x32xf32, #tpu.memory_space<vmem>>, vector<1x32xf32>
    %136 = vector.broadcast %135 : vector<1x32xf32> to vector<8x32xf32>
    %137 = arith.addf %134, %136 : vector<8x32xf32>
    %138 = arith.truncf %137 : vector<8x32xf32> to vector<8x32xbf16>
    %c0_64 = arith.constant 0 : index
    %c0_65 = arith.constant 0 : index
    %c0_66 = arith.constant 0 : index
    %139 = vector.load %arg10[%c0_64, %c0_65, %c0_66] : memref<1x8x32xbf16, #tpu.memory_space<vmem>>, vector<1x8x32xbf16>
    %140 = vector.shape_cast %139 : vector<1x8x32xbf16> to vector<8x32xbf16>
    %141 = vector.shape_cast %138 : vector<8x32xbf16> to vector<1x8x32xbf16>
    tpu.vector_store %arg10[%c0_64, %c0_65, %c0_66], %141 {strides = array<i32>} : memref<1x8x32xbf16, #tpu.memory_space<vmem>>, vector<1x8x32xbf16>,
    return
  }
  func.func @transform_0(%arg0: i32) -> (i32, i32, i32) {
    %c0_i32 = arith.constant 0 : i32
    %c0_i32_0 = arith.constant 0 : i32
    %c0_i32_1 = arith.constant 0 : i32
    return %arg0, %c0_i32, %c0_i32_0 : i32, i32, i32
  }
  func.func @transform_1(%arg0: i32) -> (i32, i32, i32) {
    %c0_i32 = arith.constant 0 : i32
    %c0_i32_0 = arith.constant 0 : i32
    %c0_i32_1 = arith.constant 0 : i32
    return %arg0, %c0_i32, %c0_i32_0 : i32, i32, i32
  }
  func.func @transform_2(%arg0: i32) -> (i32, i32) {
    %c0_i32 = arith.constant 0 : i32
    %c0_i32_0 = arith.constant 0 : i32
    %c0_i32_1 = arith.constant 0 : i32
    return %c0_i32, %c0_i32_0 : i32, i32
  }
  func.func @transform_3(%arg0: i32) -> (i32, i32) {
    %c0_i32 = arith.constant 0 : i32
    %c0_i32_0 = arith.constant 0 : i32
    %c0_i32_1 = arith.constant 0 : i32
    return %c0_i32, %c0_i32_0 : i32, i32
  }
  func.func @transform_4(%arg0: i32) -> (i32, i32) {
    %c0_i32 = arith.constant 0 : i32
    %c0_i32_0 = arith.constant 0 : i32
    %c0_i32_1 = arith.constant 0 : i32
    return %c0_i32, %c0_i32_0 : i32, i32
  }
  func.func @transform_5(%arg0: i32) -> (i32, i32) {
    %c0_i32 = arith.constant 0 : i32
    %c0_i32_0 = arith.constant 0 : i32
    %c0_i32_1 = arith.constant 0 : i32
    return %c0_i32, %c0_i32_0 : i32, i32
  }
  func.func @transform_6(%arg0: i32) -> (i32, i32) {
    %c0_i32 = arith.constant 0 : i32
    %c0_i32_0 = arith.constant 0 : i32
    %c0_i32_1 = arith.constant 0 : i32
    return %c0_i32, %c0_i32_0 : i32, i32
  }
  func.func @transform_7(%arg0: i32) -> (i32, i32) {
    %c0_i32 = arith.constant 0 : i32
    %c0_i32_0 = arith.constant 0 : i32
    %c0_i32_1 = arith.constant 0 : i32
    return %c0_i32, %c0_i32_0 : i32, i32
  }
  func.func @transform_8(%arg0: i32) -> (i32, i32, i32) {
    %c0_i32 = arith.constant 0 : i32
    %c0_i32_0 = arith.constant 0 : i32
    %c0_i32_1 = arith.constant 0 : i32
    return %arg0, %c0_i32, %c0_i32_0 : i32, i32, i32
  }
  func.func @transform_9(%arg0: i32) -> (i32, i32, i32) {
    %c0_i32 = arith.constant 0 : i32
    %c0_i32_0 = arith.constant 0 : i32
    %c0_i32_1 = arith.constant 0 : i32
    return %arg0, %c0_i32, %c0_i32_0 : i32, i32, i32
  }
  func.func @transform_10(%arg0: i32) -> (i32, i32, i32, i32) {
    %c0_i32 = arith.constant 0 : i32
    %c0_i32_0 = arith.constant 0 : i32
    %c0_i32_1 = arith.constant 0 : i32
    %c0_i32_2 = arith.constant 0 : i32
    return %arg0, %c0_i32, %c0_i32_0, %c0_i32_1 : i32, i32, i32, i32
  }
}

module attributes {stable_mosaic.version = 11 : i64} {
  func.func @_linear_kernel(%arg0: i32, %arg1: i32, %arg2: memref<16x32xbf16, #tpu.memory_space<vmem>>, %arg3: memref<32x50xbf16, #tpu.memory_space<vmem>>, %arg4: memref<1x50xf32, #tpu.memory_space<vmem>>, %arg5: memref<16x50xf32, #tpu.memory_space<vmem>>) attributes {dimension_semantics = [#tpu.dimension_semantics<parallel>, #tpu.dimension_semantics<parallel>], iteration_bounds = array<i64: 1, 1>, scalar_prefetch = 0 : i64, scratch_operands = 0 : i64, tpu.core_type = #tpu.core_type<tc>, window_params = [{transform_indices = @transform_0, window_bounds = array<i64: 16, 32>}, {transform_indices = @transform_1, window_bounds = array<i64: 32, 50>}, {transform_indices = @transform_2, window_bounds = array<i64: 1, 50>}, {transform_indices = @transform_3, window_bounds = array<i64: 16, 50>}]} {
    %c0 = arith.constant 0 : index
    %c0_0 = arith.constant 0 : index
    %0 = vector.load %arg2[%c0, %c0_0] : memref<16x32xbf16, #tpu.memory_space<vmem>>, vector<16x32xbf16>
    %c0_1 = arith.constant 0 : index
    %c0_2 = arith.constant 0 : index
    %1 = vector.load %arg3[%c0_1, %c0_2] : memref<32x50xbf16, #tpu.memory_space<vmem>>, vector<32x50xbf16>
    %cst = arith.constant dense<0.000000e+00> : vector<16x50xf32>
    %2 = tpu.matmul %0, %1, %cst {dimension_numbers = #tpu.dot_dimension_numbers<[1], [0], [0], [1], [0, 0, 1, 1], [], []>} : vector<16x32xbf16>, vector<32x50xbf16>, vector<16x50xf32> -> vector<16x50xf32>
    %c0_3 = arith.constant 0 : index
    %c0_4 = arith.constant 0 : index
    %3 = vector.load %arg4[%c0_3, %c0_4] : memref<1x50xf32, #tpu.memory_space<vmem>>, vector<1x50xf32>
    %4 = vector.broadcast %3 : vector<1x50xf32> to vector<16x50xf32>
    %5 = arith.addf %2, %4 : vector<16x50xf32>
    %c0_5 = arith.constant 0 : index
    %c0_6 = arith.constant 0 : index
    %6 = vector.load %arg5[%c0_5, %c0_6] : memref<16x50xf32, #tpu.memory_space<vmem>>, vector<16x50xf32>
    tpu.vector_store %arg5[%c0_5, %c0_6], %5 {strides = array<i32>} : memref<16x50xf32, #tpu.memory_space<vmem>>, vector<16x50xf32>,
    return
  }
  func.func @transform_0(%arg0: i32, %arg1: i32) -> (i32, i32) {
    %c0_i32 = arith.constant 0 : i32
    %c0_i32_0 = arith.constant 0 : i32
    return %arg0, %c0_i32 : i32, i32
  }
  func.func @transform_1(%arg0: i32, %arg1: i32) -> (i32, i32) {
    %c0_i32 = arith.constant 0 : i32
    %c0_i32_0 = arith.constant 0 : i32
    return %c0_i32, %arg1 : i32, i32
  }
  func.func @transform_2(%arg0: i32, %arg1: i32) -> (i32, i32) {
    %c0_i32 = arith.constant 0 : i32
    %c0_i32_0 = arith.constant 0 : i32
    return %c0_i32, %arg1 : i32, i32
  }
  func.func @transform_3(%arg0: i32, %arg1: i32) -> (i32, i32) {
    %c0_i32 = arith.constant 0 : i32
    return %arg0, %arg1 : i32, i32
  }
}

</mosaic_0001>

<llo_original>
// kernel: decoder_forward.13
$region0: #{decoder_forward.13}
  #allocation0 [shape = 'u32[]', space=smem, size = 0x4, offset = 0x4, fixed_abs, tag = 'smem constant byte address 0x4 - core index']
  #allocation1 [shape = 'u32[144,128]{1,0:T(1,128)}', space=vmem, size = 0x12000, scoped, tag = 'internal scratch']
  %s0 = inlined_call_operand.vmem [shape: bf16[16,32], index: 0, kind: input, shape index: {}]
  %s1 = inlined_call_operand.vmem [shape: bf16[32,50], index: 1, kind: input, shape index: {}]
  %s2 = inlined_call_operand.vmem [shape: f32[1,50], index: 2, kind: input, shape index: {}]
  %s3 = inlined_call_operand.hbm [shape: f32[16,50], index: 3, kind: output, shape index: {}]
  %s4 = sld [smem:[#allocation0]]
  $region22: #{decoder_forward.13} parent=0
    _
  %s6 = ssub.s32 1, %s4
  %s7 = scalar_select 0, %s6, %s4
  $region1: #{decoder_forward.13} parent=0
    #allocation2 [shape = 'u8[8192]{0}', space=vmem, size = 0x2000, scoped, tag = 'output window, operand 0, single buffered']
    #allocation3 [shape = 's32[1]{0}', space=sflag, size = 0x4, scoped, tag = 'scoped memory for decoder_forward.13']
    %8 = vsyncpa [#allocation3], 0
    // Predicated region
    $region2: #{decoder_forward.13} parent=1 // pred_check
      _
    $region3: #{decoder_forward.13} parent=1 // pred_check_branch
      %10 = sbr.rel (0) target = $region5
    $region4: #{decoder_forward.13} parent=1 // pred_region
      _
    $region5: #{decoder_forward.13} parent=1 // pred_fallthru
      _
    // Predicated region
    $region6: #{decoder_forward.13} parent=1 // pred_check
      _
    $region7: #{decoder_forward.13} parent=1 // pred_check_branch
      %12 = sbr.rel (0) target = $region9
    $region8: #{decoder_forward.13} parent=1 // pred_region
      _
    $region9: #{decoder_forward.13} parent=1 // pred_fallthru
      _
    // Predicated region
    $region10: #{decoder_forward.13} parent=1 // pred_check
      _
    $region11: #{decoder_forward.13} parent=1 // pred_check_branch
      %14 = sbr.rel (0) target = $region13
    $region12: #{decoder_forward.13} parent=1 // pred_region
      _
    $region13: #{decoder_forward.13} parent=1 // pred_fallthru
      _
    %v16 = vld [vmem:[%s0] sm:$0xf]
    %v17 = vld [vmem:[%s0 + $0x4] sm:$0xf]
    %v18 = vld [vmem:[%s1] sm:$0xf]
    %v19 = vld [vmem:[%s1 + $0x4] sm:$0xf]
    %v20 = vld [vmem:[%s1 + $0x8] sm:$0xf]
    %v21 = vld [vmem:[%s1 + $0xc] sm:$0xf]
    %v22 = vld [vmem:[%s2] sm:$0x1]
    %v24 = vlaneseq
    %v25 = vshrl.u32 %v24, 7
    %v26 = vsub.s32 0, %v25
    %v27 = vrot.slane %v22, %v26
    %v31 = vunpack.c.l.b16 %v16
    %v32 = vunpack.c.l.b16 %v17
    %v33 = vpack.c.b16 %v32, %v31
    %v38 = vunpack.c.l.b16 %v18
    %v39 = vunpack.c.l.b16 %v19
    %v40 = vunpack.c.l.b16 %v20
    %v41 = vunpack.c.l.b16 %v21
    %v42 = vpack.c.b16 %v39, %v38
    %v43 = vpack.c.b16 %v41, %v40
    %vm46 = vcmask 261120
    %v48 = vsel %vm46, %v33, 0
    %50 = vmatprep.subr.bf16.mxu0 0
    %51 = vmatpush1.bf16.msra.mxu0 0
    %52 = vmatprep.subr.bf16.mxu0 0
    %53 = vmatpush1.bf16.msra.mxu0 0
    %54 = vmatprep.subr.bf16.mxu0 0
    %55 = vmatpush1.bf16.msra.mxu0 0
    %56 = vmatprep.subr.bf16.mxu0 0
    %57 = vmatpush1.bf16.msra.mxu0 0
    %58 = vmatprep.subr.bf16.mxu0 0
    %59 = vmatpush1.bf16.msra.mxu0 0
    %60 = vmatprep.subr.bf16.mxu0 0
    %61 = vmatpush1.bf16.msra.mxu0 0
    %62 = vmatprep.subr.bf16.mxu0 0
    %63 = vmatpush1.bf16.msra.mxu0 %v43
    %64 = vmatprep.subr.bf16.mxu0 0
    %65 = vmatpush1.bf16.msra.mxu0 %v42
    %66 = vmatprep.subr.bf16.mxu0 0
    %67 = vmatpush2.bf16.msra.mxu0 0
    %68 = vmatprep.subr.bf16.mxu0 0
    %69 = vmatpush2.bf16.msra.mxu0 0
    %70 = vmatprep.subr.bf16.mxu0 0
    %71 = vmatpush2.bf16.msra.mxu0 0
    %72 = vmatprep.subr.bf16.mxu0 0
    %73 = vmatpush2.bf16.msra.mxu0 0
    %74 = vmatprep.subr.bf16.mxu0 0
    %75 = vmatpush2.bf16.msra.mxu0 0
    %76 = vmatprep.subr.bf16.mxu0 0
    %77 = vmatpush2.bf16.msra.mxu0 0
    %78 = vmatprep.subr.bf16.mxu0 0
    %79 = vmatpush2.bf16.msra.mxu0 0
    %80 = vmatprep.subr.bf16.mxu0 0
    %81 = vmatpush2.bf16.msra.mxu0 0
    %82 = vmatprep.mubr.bf16.mxu0 0
    %83 = vmatmul.mubr.bf16.gmra.mxu0 %v48
    %v84 = vpop.f32.mrf.mxu0
    %v85 = vadd.f32 %v27, %v84
    %v86 = vpop.f32.mrf.mxu0
    %v87 = vpop.f32.mrf.mxu0
    %v88 = vadd.f32 %v27, %v87
    %v89 = vpop.f32.mrf.mxu0
    %90 = vdwg.mxu0
    %vm91 = vcmask 408576
    %92 = vst.msk [vmem:[#allocation2] sm:$0xff] %vm91, %v85
    %93 = vst.msk [vmem:[#allocation2 + $0x8] sm:$0xff] %vm91, %v88
    // Predicated region
    $region14: #{decoder_forward.13} parent=1 // pred_check
      _
    $region15: #{decoder_forward.13} parent=1 // pred_check_branch
      %95 = sbr.rel (0) target = $region17
    $region16: #{decoder_forward.13} parent=1 // pred_region
      %s97 = ssub.s32 256, 256
      %98 = vsyncadd [#allocation3], %s97
      %s99 = sshll.u32 [#allocation2], 4
      %s100 = int_to_ptr.vmem [resolvable:$true] %s99
      %105 = dma.vmem_to_hbm [thread:$0]  %s100, 256, %s3, [#allocation3], 128, 128, 8
    $region17: #{decoder_forward.13} parent=1 // pred_fallthru
      _
    // Predicated region
    $region18: #{decoder_forward.13} parent=1 // pred_check
      _
    $region19: #{decoder_forward.13} parent=1 // pred_check_branch
      %107 = sbr.rel (0) target = $region21
    $region20: #{decoder_forward.13} parent=1 // pred_region
      %108 = dma.done [#allocation3], 256
    $region21: #{decoder_forward.13} parent=1 // pred_fallthru
      _
    %109 = vsyncpa [#allocation3], 1

// kernel: decoder_forward.9
$region0: #{decoder_forward.9}
  #allocation0 [shape = 'u32[]', space=smem, size = 0x4, offset = 0x4, fixed_abs, tag = 'smem constant byte address 0x4 - core index']
  #allocation1 [shape = 'u32[144,128]{1,0:T(1,128)}', space=vmem, size = 0x12000, scoped, tag = 'internal scratch']
  %s0 = inlined_call_operand.vmem [shape: bf16[16,32], index: 0, kind: input, shape index: {}]
  %s1 = inlined_call_operand.vmem [shape: bf16[32,64], index: 1, kind: input, shape index: {}]
  %s2 = inlined_call_operand.vmem [shape: f32[1,64], index: 2, kind: input, shape index: {}]
  %s3 = inlined_call_operand.vmem [shape: bf16[64,32], index: 3, kind: input, shape index: {}]
  %s4 = inlined_call_operand.vmem [shape: f32[1,32], index: 4, kind: input, shape index: {}]
  %s5 = inlined_call_operand.vmem [shape: bf16[16,32], index: 5, kind: output, shape index: {}]
  %s6 = sld [smem:[#allocation0]]
  $region30: #{decoder_forward.9} parent=0
    _
  %s8 = ssub.s32 1, %s6
  %s9 = scalar_select 0, %s8, %s6
  // Predicated region
  $region2: #{decoder_forward.9} parent=0 // pred_check
    _
  $region3: #{decoder_forward.9} parent=0 // pred_check_branch
    %11 = sbr.rel (0) target = $region5
  $region4: #{decoder_forward.9} parent=0 // pred_region
    _
  $region5: #{decoder_forward.9} parent=0 // pred_fallthru
    _
  // Predicated region
  $region6: #{decoder_forward.9} parent=0 // pred_check
    _
  $region7: #{decoder_forward.9} parent=0 // pred_check_branch
    %13 = sbr.rel (0) target = $region9
  $region8: #{decoder_forward.9} parent=0 // pred_region
    _
  $region9: #{decoder_forward.9} parent=0 // pred_fallthru
    _
  // Predicated region
  $region10: #{decoder_forward.9} parent=0 // pred_check
    _
  $region11: #{decoder_forward.9} parent=0 // pred_check_branch
    %15 = sbr.rel (0) target = $region13
  $region12: #{decoder_forward.9} parent=0 // pred_region
    _
  $region13: #{decoder_forward.9} parent=0 // pred_fallthru
    _
  // Predicated region
  $region14: #{decoder_forward.9} parent=0 // pred_check
    _
  $region15: #{decoder_forward.9} parent=0 // pred_check_branch
    %17 = sbr.rel (0) target = $region17
  $region16: #{decoder_forward.9} parent=0 // pred_region
    _
  $region17: #{decoder_forward.9} parent=0 // pred_fallthru
    _
  // Predicated region
  $region18: #{decoder_forward.9} parent=0 // pred_check
    _
  $region19: #{decoder_forward.9} parent=0 // pred_check_branch
    %19 = sbr.rel (0) target = $region21
  $region20: #{decoder_forward.9} parent=0 // pred_region
    _
  $region21: #{decoder_forward.9} parent=0 // pred_fallthru
    _
  %v21 = vld [vmem:[%s0] sm:$0xf]
  %v22 = vld [vmem:[%s0 + $0x4] sm:$0xf]
  %v23 = vld [vmem:[%s1] sm:$0xf]
  %v24 = vld [vmem:[%s1 + $0x4] sm:$0xf]
  %v25 = vld [vmem:[%s1 + $0x8] sm:$0xf]
  %v26 = vld [vmem:[%s1 + $0xc] sm:$0xf]
  %v27 = vld [vmem:[%s2] sm:$0x1]
  %v29 = vlaneseq
  %v30 = vshrl.u32 %v29, 7
  %v31 = vsub.s32 0, %v30
  %v32 = vrot.slane %v27, %v31
  %v36 = vunpack.c.l.b16 %v21
  %v37 = vunpack.c.l.b16 %v22
  %v38 = vpack.c.b16 %v37, %v36
  %v43 = vunpack.c.l.b16 %v23
  %v44 = vunpack.c.l.b16 %v24
  %v45 = vunpack.c.l.b16 %v25
  %v46 = vunpack.c.l.b16 %v26
  %v47 = vpack.c.b16 %v44, %v43
  %v48 = vpack.c.b16 %v46, %v45
  %vm51 = vcmask 261120
  %v53 = vsel %vm51, %v38, 0
  %55 = vmatprep.subr.bf16.mxu0 0
  %56 = vmatpush1.bf16.msra.mxu0 0
  %57 = vmatprep.subr.bf16.mxu0 0
  %58 = vmatpush1.bf16.msra.mxu0 0
  %59 = vmatprep.subr.bf16.mxu0 0
  %60 = vmatpush1.bf16.msra.mxu0 0
  %61 = vmatprep.subr.bf16.mxu0 0
  %62 = vmatpush1.bf16.msra.mxu0 0
  %63 = vmatprep.subr.bf16.mxu0 0
  %64 = vmatpush1.bf16.msra.mxu0 0
  %65 = vmatprep.subr.bf16.mxu0 0
  %66 = vmatpush1.bf16.msra.mxu0 0
  %67 = vmatprep.subr.bf16.mxu0 0
  %68 = vmatpush1.bf16.msra.mxu0 %v48
  %69 = vmatprep.subr.bf16.mxu0 0
  %70 = vmatpush1.bf16.msra.mxu0 %v47
  %71 = vmatprep.subr.bf16.mxu0 0
  %72 = vmatpush2.bf16.msra.mxu0 0
  %73 = vmatprep.subr.bf16.mxu0 0
  %74 = vmatpush2.bf16.msra.mxu0 0
  %75 = vmatprep.subr.bf16.mxu0 0
  %76 = vmatpush2.bf16.msra.mxu0 0
  %77 = vmatprep.subr.bf16.mxu0 0
  %78 = vmatpush2.bf16.msra.mxu0 0
  %79 = vmatprep.subr.bf16.mxu0 0
  %80 = vmatpush2.bf16.msra.mxu0 0
  %81 = vmatprep.subr.bf16.mxu0 0
  %82 = vmatpush2.bf16.msra.mxu0 0
  %83 = vmatprep.subr.bf16.mxu0 0
  %84 = vmatpush2.bf16.msra.mxu0 0
  %85 = vmatprep.subr.bf16.mxu0 0
  %86 = vmatpush2.bf16.msra.mxu0 0
  %87 = vmatprep.mubr.bf16.mxu0 0
  %88 = vmatmul.mubr.bf16.gmra.mxu0 %v53
  %v89 = vpop.f32.mrf.mxu0
  %v90 = vadd.f32 %v32, %v89
  %v91 = vpop.f32.mrf.mxu0
  %v92 = vpop.f32.mrf.mxu0
  %v93 = vadd.f32 %v32, %v92
  %v94 = vpop.f32.mrf.mxu0
  %95 = vdwg.mxu0
  %v96 = vmax.f32 %v90, 0.0
  %v97 = vmax.f32 %v93, 0.0
  %v98 = vpack.c.bf16 %v97, %v96
  %v99 = vld [vmem:[%s3] sm:$0xf]
  %v100 = vld [vmem:[%s3 + $0x4] sm:$0xf]
  %v101 = vld [vmem:[%s3 + $0x8] sm:$0xf]
  %v102 = vld [vmem:[%s3 + $0xc] sm:$0xf]
  %v103 = vld [vmem:[%s3 + $0x10] sm:$0xf]
  %v104 = vld [vmem:[%s3 + $0x14] sm:$0xf]
  %v105 = vld [vmem:[%s3 + $0x18] sm:$0xf]
  %v106 = vld [vmem:[%s3 + $0x1c] sm:$0xf]
  %v107 = vld [vmem:[%s4] sm:$0x1]
  %v109 = vlaneseq
  %v110 = vshrl.u32 %v109, 7
  %v111 = vsub.s32 0, %v110
  %v112 = vrot.slane %v107, %v111
  %v122 = vunpack.c.l.b16 %v99
  %v123 = vunpack.c.l.b16 %v100
  %v124 = vunpack.c.l.b16 %v101
  %v125 = vunpack.c.l.b16 %v102
  %v126 = vunpack.c.l.b16 %v103
  %v127 = vunpack.c.l.b16 %v104
  %v128 = vunpack.c.l.b16 %v105
  %v129 = vunpack.c.l.b16 %v106
  %v130 = vpack.c.b16 %v123, %v122
  %v131 = vpack.c.b16 %v125, %v124
  %v132 = vpack.c.b16 %v127, %v126
  %v133 = vpack.c.b16 %v129, %v128
  %vm138 = vcmask 523264
  %v140 = vsel %vm138, %v98, 0
  %142 = vmatprep.subr.bf16.mxu0 0
  %143 = vmatpush1.bf16.msra.mxu0 0
  %144 = vmatprep.subr.bf16.mxu0 0
  %145 = vmatpush1.bf16.msra.mxu0 0
  %146 = vmatprep.subr.bf16.mxu0 0
  %147 = vmatpush1.bf16.msra.mxu0 0
  %148 = vmatprep.subr.bf16.mxu0 0
  %149 = vmatpush1.bf16.msra.mxu0 0
  %150 = vmatprep.subr.bf16.mxu0 0
  %151 = vmatpush1.bf16.msra.mxu0 %v133
  %152 = vmatprep.subr.bf16.mxu0 0
  %153 = vmatpush1.bf16.msra.mxu0 %v132
  %154 = vmatprep.subr.bf16.mxu0 0
  %155 = vmatpush1.bf16.msra.mxu0 %v131
  %156 = vmatprep.subr.bf16.mxu0 0
  %157 = vmatpush1.bf16.msra.mxu0 %v130
  %158 = vmatprep.subr.bf16.mxu0 0
  %159 = vmatpush2.bf16.msra.mxu0 0
  %160 = vmatprep.subr.bf16.mxu0 0
  %161 = vmatpush2.bf16.msra.mxu0 0
  %162 = vmatprep.subr.bf16.mxu0 0
  %163 = vmatpush2.bf16.msra.mxu0 0
  %164 = vmatprep.subr.bf16.mxu0 0
  %165 = vmatpush2.bf16.msra.mxu0 0
  %166 = vmatprep.subr.bf16.mxu0 0
  %167 = vmatpush2.bf16.msra.mxu0 0
  %168 = vmatprep.subr.bf16.mxu0 0
  %169 = vmatpush2.bf16.msra.mxu0 0
  %170 = vmatprep.subr.bf16.mxu0 0
  %171 = vmatpush2.bf16.msra.mxu0 0
  %172 = vmatprep.subr.bf16.mxu0 0
  %173 = vmatpush2.bf16.msra.mxu0 0
  %174 = vmatprep.mubr.bf16.mxu0 0
  %175 = vmatmul.mubr.bf16.gmra.mxu0 %v140
  %v176 = vpop.f32.mrf.mxu0
  %v177 = vadd.f32 %v112, %v176
  %v178 = vpop.f32.mrf.mxu0
  %v179 = vpop.f32.mrf.mxu0
  %v180 = vadd.f32 %v112, %v179
  %v181 = vpop.f32.mrf.mxu0
  %182 = vdwg.mxu0
  %v183 = vpack.c.bf16 %v180, %v177
  %v185 = vunpack.c.l.b16 %v183
  %v186 = vunpack.c.h.b16 %v183
  %v187 = vpack.c.b16 %v185, %v185
  %v188 = vpack.c.b16 %v186, %v186
  %vm191 = vcmask 257024
  %192 = vst.msk [vmem:[%s5] sm:$0xf] %vm191, %v187
  %193 = vst.msk [vmem:[%s5 + $0x4] sm:$0xf] %vm191, %v188
  // Predicated region
  $region22: #{decoder_forward.9} parent=0 // pred_check
    _
  $region23: #{decoder_forward.9} parent=0 // pred_check_branch
    %195 = sbr.rel (0) target = $region25
  $region24: #{decoder_forward.9} parent=0 // pred_region
    _
  $region25: #{decoder_forward.9} parent=0 // pred_fallthru
    _
  // Predicated region
  $region26: #{decoder_forward.9} parent=0 // pred_check
    _
  $region27: #{decoder_forward.9} parent=0 // pred_check_branch
    %197 = sbr.rel (0) target = $region29
  $region28: #{decoder_forward.9} parent=0 // pred_region
    _
  $region29: #{decoder_forward.9} parent=0 // pred_fallthru
    _

// kernel: decoder_forward.7
$region0: #{decoder_forward.7}
  #allocation0 [shape = 'u32[]', space=smem, size = 0x4, offset = 0x4, fixed_abs, tag = 'smem constant byte address 0x4 - core index']
  #allocation1 [shape = 'u32[144,128]{1,0:T(1,128)}', space=vmem, size = 0x12000, scoped, tag = 'internal scratch']
  %s0 = inlined_call_operand.vmem [shape: bf16[2,8,32], index: 0, kind: input, shape index: {}, may-alias: {0,1}]
  %s1 = inlined_call_operand.vmem [shape: bf16[2,8,32], index: 1, kind: input, shape index: {}, may-alias: {0,1}]
  %s2 = inlined_call_operand.vmem [shape: bf16[32,32], index: 2, kind: input, shape index: {}]
  %s3 = inlined_call_operand.vmem [shape: f32[1,32], index: 3, kind: input, shape index: {}]
  %s4 = inlined_call_operand.vmem [shape: bf16[32,64], index: 4, kind: input, shape index: {}]
  %s5 = inlined_call_operand.vmem [shape: f32[1,64], index: 5, kind: input, shape index: {}]
  %s6 = inlined_call_operand.vmem [shape: bf16[32,32], index: 6, kind: input, shape index: {}]
  %s7 = inlined_call_operand.vmem [shape: f32[1,32], index: 7, kind: input, shape index: {}]
  %s8 = inlined_call_operand.vmem [shape: f32[2,8,8], index: 8, kind: input, shape index: {}]
  %s9 = inlined_call_operand.vmem [shape: bf16[2,8,32], index: 9, kind: output, shape index: {0}]
  %s10 = inlined_call_operand.hbm [shape: f32[2,4,8,8], index: 10, kind: output, shape index: {1}]
  %11 = xla_tuple %s9, %s10
  %s12 = sld [smem:[#allocation0]]
  $region77: #{decoder_forward.7} parent=0
    _
  %s14 = ssub.s32 1, %s12
  %s15 = scalar_select 0, %s14, %s12
  $region1: #{decoder_forward.7} parent=0
    #allocation2 [shape = 'u8[32768]{0}', space=vmem, size = 0x8000, scoped, tag = 'output window, operand 1']
    #allocation3 [shape = 's32[2]{0}', space=sflag, size = 0x8, scoped, tag = 'scoped memory for decoder_forward.7']
    %16 = vsyncpa [#allocation3], 0
    %s17 = scalar_lea.sflag [#allocation3], 1
    %18 = vsyncpa %s17, 0
    loop: start=0, step=1, limit=4
    $region2: #{decoder_forward.7} parent=1 // loop_pre_header
      _
    $region3: #{decoder_forward.7} parent=1 // loop_header
      %s20 = sphi 0, %s24
      %p21 = scmp.ge.s32.totalorder %s20, 4
      %s30 = sphi 0, %s32
      %s33 = sphi 0, %s30
      %s34 = sphi 0, %s33
      %s50 = sphi 0, %s34
      %s56 = sphi 0, %s58
      %s59 = sphi 0, %s56
      %s60 = sphi 0, %s59
      %s76 = sphi 0, %s60
      %s80 = sphi 0, %s80
      %s82 = sphi 0, %s80
      %s83 = sphi 0, %s82
      %s97 = sphi 0, %s83
      %s101 = sphi 0, %s101
      %s103 = sphi 0, %s101
      %s104 = sphi 0, %s103
      %s118 = sphi 0, %s104
      %s122 = sphi 0, %s122
      %s124 = sphi 0, %s122
      %s125 = sphi 0, %s124
      %s139 = sphi 0, %s125
      %s143 = sphi 0, %s143
      %s145 = sphi 0, %s143
      %s146 = sphi 0, %s145
      %s160 = sphi 0, %s146
      %s164 = sphi 0, %s164
      %s166 = sphi 0, %s164
      %s167 = sphi 0, %s166
      %s181 = sphi 0, %s167
      %s185 = sphi 0, %s185
      %s187 = sphi 0, %s185
      %s188 = sphi 0, %s187
      %s202 = sphi 0, %s188
      %s208 = sphi 0, %s210
      %s211 = sphi 0, %s208
      %s212 = sphi 0, %s211
      %s228 = sphi 0, %s212
      %s234 = sphi 0, %s236
      %s237 = sphi 0, %s234
      %s238 = sphi 0, %s237
      %s254 = sphi 0, %s238
      %s260 = sphi 0, %s262
      %s263 = sphi 0, %s260
      %s264 = sphi 0, %s263
      %s280 = sphi 0, %s264
    $region4: #{decoder_forward.7} parent=1 // loop_header_branch
      %23 = sbr.rel (%p21) target = $region8
    $region5: #{decoder_forward.7} parent=1 // loop_body
      %s25 = ssub.s32 %s20, 1
      %s26 = ssub.s32 %s20, 2
      %s27 = sadd.s32 %s20, 1
      %s28 = ssub.s32 %s20, %s27
      %p29 = scmp.eq.s32.totalorder %s28, 0
      %s31 = sadd.s32 %s30, 1
      %s32 = scalar_select %p29, %s30, %s31
      %p35 = pneg %p29
      %p36 = scmp.eq.s32.totalorder %s20, 1
      %p37 = por %p35, %p36
      %p38 = scmp.ne.s32.totalorder %s30, %s33
      %p39 = scmp.eq.s32.totalorder %s20, 0
      %p40 = por %p38, %p39
      %p41 = scmp.ne.s32.totalorder %s30, %s33
      %p42 = scmp.eq.s32.totalorder %s25, 1
      %p43 = por %p41, %p42
      %p44 = scmp.ne.s32.totalorder %s33, %s34
      %p45 = scmp.eq.s32.totalorder %s25, 0
      %p46 = por %p44, %p45
      %p47 = scmp.ne.s32.totalorder %s33, %s34
      %p48 = scmp.eq.s32.totalorder %s26, 1
      %p49 = por %p47, %p48
      %p51 = scmp.ne.s32.totalorder %s34, %s50
      %p52 = scmp.eq.s32.totalorder %s26, 0
      %p53 = por %p51, %p52
      %s54 = ssub.s32 %s20, %s27
      %p55 = scmp.eq.s32.totalorder %s54, 0
      %s57 = sadd.s32 %s56, 1
      %s58 = scalar_select %p55, %s56, %s57
      %p61 = pneg %p55
      %p62 = scmp.eq.s32.totalorder %s20, 1
      %p63 = por %p61, %p62
      %p64 = scmp.ne.s32.totalorder %s56, %s59
      %p65 = scmp.eq.s32.totalorder %s20, 0
      %p66 = por %p64, %p65
      %p67 = scmp.ne.s32.totalorder %s56, %s59
      %p68 = scmp.eq.s32.totalorder %s25, 1
      %p69 = por %p67, %p68
      %p70 = scmp.ne.s32.totalorder %s59, %s60
      %p71 = scmp.eq.s32.totalorder %s25, 0
      %p72 = por %p70, %p71
      %p73 = scmp.ne.s32.totalorder %s59, %s60
      %p74 = scmp.eq.s32.totalorder %s26, 1
      %p75 = por %p73, %p74
      %p77 = scmp.ne.s32.totalorder %s60, %s76
      %p78 = scmp.eq.s32.totalorder %s26, 0
      %p79 = por %p77, %p78
      %s81 = sadd.s32 %s80, 1
      %p84 = scmp.eq.s32.totalorder %s20, 1
      %p85 = scmp.ne.s32.totalorder %s80, %s82
      %p86 = scmp.eq.s32.totalorder %s20, 0
      %p87 = por %p85, %p86
      %p88 = scmp.ne.s32.totalorder %s80, %s82
      %p89 = scmp.eq.s32.totalorder %s25, 1
      %p90 = por %p88, %p89
      %p91 = scmp.ne.s32.totalorder %s82, %s83
      %p92 = scmp.eq.s32.totalorder %s25, 0
      %p93 = por %p91, %p92
      %p94 = scmp.ne.s32.totalorder %s82, %s83
      %p95 = scmp.eq.s32.totalorder %s26, 1
      %p96 = por %p94, %p95
      %p98 = scmp.ne.s32.totalorder %s83, %s97
      %p99 = scmp.eq.s32.totalorder %s26, 0
      %p100 = por %p98, %p99
      %s102 = sadd.s32 %s101, 1
      %p105 = scmp.eq.s32.totalorder %s20, 1
      %p106 = scmp.ne.s32.totalorder %s101, %s103
      %p107 = scmp.eq.s32.totalorder %s20, 0
      %p108 = por %p106, %p107
      %p109 = scmp.ne.s32.totalorder %s101, %s103
      %p110 = scmp.eq.s32.totalorder %s25, 1
      %p111 = por %p109, %p110
      %p112 = scmp.ne.s32.totalorder %s103, %s104
      %p113 = scmp.eq.s32.totalorder %s25, 0
      %p114 = por %p112, %p113
      %p115 = scmp.ne.s32.totalorder %s103, %s104
      %p116 = scmp.eq.s32.totalorder %s26, 1
      %p117 = por %p115, %p116
      %p119 = scmp.ne.s32.totalorder %s104, %s118
      %p120 = scmp.eq.s32.totalorder %s26, 0
      %p121 = por %p119, %p120
      %s123 = sadd.s32 %s122, 1
      %p126 = scmp.eq.s32.totalorder %s20, 1
      %p127 = scmp.ne.s32.totalorder %s122, %s124
      %p128 = scmp.eq.s32.totalorder %s20, 0
      %p129 = por %p127, %p128
      %p130 = scmp.ne.s32.totalorder %s122, %s124
      %p131 = scmp.eq.s32.totalorder %s25, 1
      %p132 = por %p130, %p131
      %p133 = scmp.ne.s32.totalorder %s124, %s125
      %p134 = scmp.eq.s32.totalorder %s25, 0
      %p135 = por %p133, %p134
      %p136 = scmp.ne.s32.totalorder %s124, %s125
      %p137 = scmp.eq.s32.totalorder %s26, 1
      %p138 = por %p136, %p137
      %p140 = scmp.ne.s32.totalorder %s125, %s139
      %p141 = scmp.eq.s32.totalorder %s26, 0
      %p142 = por %p140, %p141
      %s144 = sadd.s32 %s143, 1
      %p147 = scmp.eq.s32.totalorder %s20, 1
      %p148 = scmp.ne.s32.totalorder %s143, %s145
      %p149 = scmp.eq.s32.totalorder %s20, 0
      %p150 = por %p148, %p149
      %p151 = scmp.ne.s32.totalorder %s143, %s145
      %p152 = scmp.eq.s32.totalorder %s25, 1
      %p153 = por %p151, %p152
      %p154 = scmp.ne.s32.totalorder %s145, %s146
      %p155 = scmp.eq.s32.totalorder %s25, 0
      %p156 = por %p154, %p155
      %p157 = scmp.ne.s32.totalorder %s145, %s146
      %p158 = scmp.eq.s32.totalorder %s26, 1
      %p159 = por %p157, %p158
      %p161 = scmp.ne.s32.totalorder %s146, %s160
      %p162 = scmp.eq.s32.totalorder %s26, 0
      %p163 = por %p161, %p162
      %s165 = sadd.s32 %s164, 1
      %p168 = scmp.eq.s32.totalorder %s20, 1
      %p169 = scmp.ne.s32.totalorder %s164, %s166
      %p170 = scmp.eq.s32.totalorder %s20, 0
      %p171 = por %p169, %p170
      %p172 = scmp.ne.s32.totalorder %s164, %s166
      %p173 = scmp.eq.s32.totalorder %s25, 1
      %p174 = por %p172, %p173
      %p175 = scmp.ne.s32.totalorder %s166, %s167
      %p176 = scmp.eq.s32.totalorder %s25, 0
      %p177 = por %p175, %p176
      %p178 = scmp.ne.s32.totalorder %s166, %s167
      %p179 = scmp.eq.s32.totalorder %s26, 1
      %p180 = por %p178, %p179
      %p182 = scmp.ne.s32.totalorder %s167, %s181
      %p183 = scmp.eq.s32.totalorder %s26, 0
      %p184 = por %p182, %p183
      %s186 = sadd.s32 %s185, 1
      %p189 = scmp.eq.s32.totalorder %s20, 1
      %p190 = scmp.ne.s32.totalorder %s185, %s187
      %p191 = scmp.eq.s32.totalorder %s20, 0
      %p192 = por %p190, %p191
      %p193 = scmp.ne.s32.totalorder %s185, %s187
      %p194 = scmp.eq.s32.totalorder %s25, 1
      %p195 = por %p193, %p194
      %p196 = scmp.ne.s32.totalorder %s187, %s188
      %p197 = scmp.eq.s32.totalorder %s25, 0
      %p198 = por %p196, %p197
      %p199 = scmp.ne.s32.totalorder %s187, %s188
      %p200 = scmp.eq.s32.totalorder %s26, 1
      %p201 = por %p199, %p200
      %p203 = scmp.ne.s32.totalorder %s188, %s202
      %p204 = scmp.eq.s32.totalorder %s26, 0
      %p205 = por %p203, %p204
      %s206 = ssub.s32 %s20, %s27
      %p207 = scmp.eq.s32.totalorder %s206, 0
      %s209 = sadd.s32 %s208, 1
      %s210 = scalar_select %p207, %s208, %s209
      %p213 = pneg %p207
      %p214 = scmp.eq.s32.totalorder %s20, 1
      %p215 = por %p213, %p214
      %p216 = scmp.ne.s32.totalorder %s208, %s211
      %p217 = scmp.eq.s32.totalorder %s20, 0
      %p218 = por %p216, %p217
      %p219 = scmp.ne.s32.totalorder %s208, %s211
      %p220 = scmp.eq.s32.totalorder %s25, 1
      %p221 = por %p219, %p220
      %p222 = scmp.ne.s32.totalorder %s211, %s212
      %p223 = scmp.eq.s32.totalorder %s25, 0
      %p224 = por %p222, %p223
      %p225 = scmp.ne.s32.totalorder %s211, %s212
      %p226 = scmp.eq.s32.totalorder %s26, 1
      %p227 = por %p225, %p226
      %p229 = scmp.ne.s32.totalorder %s212, %s228
      %p230 = scmp.eq.s32.totalorder %s26, 0
      %p231 = por %p229, %p230
      %s232 = ssub.s32 %s20, %s27
      %p233 = scmp.eq.s32.totalorder %s232, 0
      %s235 = sadd.s32 %s234, 1
      %s236 = scalar_select %p233, %s234, %s235
      %p239 = pneg %p233
      %p240 = scmp.eq.s32.totalorder %s20, 1
      %p241 = por %p239, %p240
      %p242 = scmp.ne.s32.totalorder %s234, %s237
      %p243 = scmp.eq.s32.totalorder %s20, 0
      %p244 = por %p242, %p243
      %p245 = scmp.ne.s32.totalorder %s234, %s237
      %p246 = scmp.eq.s32.totalorder %s25, 1
      %p247 = por %p245, %p246
      %p248 = scmp.ne.s32.totalorder %s237, %s238
      %p249 = scmp.eq.s32.totalorder %s25, 0
      %p250 = por %p248, %p249
      %p251 = scmp.ne.s32.totalorder %s237, %s238
      %p252 = scmp.eq.s32.totalorder %s26, 1
      %p253 = por %p251, %p252
      %p255 = scmp.ne.s32.totalorder %s238, %s254
      %p256 = scmp.eq.s32.totalorder %s26, 0
      %p257 = por %p255, %p256
      %s258 = ssub.s32 %s20, %s27
      %p259 = scmp.eq.s32.totalorder %s258, 0
      %s261 = sadd.s32 %s260, 1
      %s262 = scalar_select %p259, %s260, %s261
      %p265 = pneg %p259
      %p266 = scmp.eq.s32.totalorder %s20, 1
      %p267 = por %p265, %p266
      %p268 = scmp.ne.s32.totalorder %s260, %s263
      %p269 = scmp.eq.s32.totalorder %s20, 0
      %p270 = por %p268, %p269
      %p271 = scmp.ne.s32.totalorder %s260, %s263
      %p272 = scmp.eq.s32.totalorder %s25, 1
      %p273 = por %p271, %p272
      %p274 = scmp.ne.s32.totalorder %s263, %s264
      %p275 = scmp.eq.s32.totalorder %s25, 0
      %p276 = por %p274, %p275
      %p277 = scmp.ne.s32.totalorder %s263, %s264
      %p278 = scmp.eq.s32.totalorder %s26, 1
      %p279 = por %p277, %p278
      %p281 = scmp.ne.s32.totalorder %s264, %s280
      %p282 = scmp.eq.s32.totalorder %s26, 0
      %p283 = por %p281, %p282
      %p284 = scmp.le.s32.totalorder 1, %s20
      %p285 = scmp.lt.s32.totalorder %s20, 3
      %p286 = pnand %p284, %p285
      %p287 = pneg %p286
      // Predicated region
      $region9: #{decoder_forward.7} parent=5 // pred_check
        _
      $region10: #{decoder_forward.7} parent=5 // pred_check_branch
        %289 = sbr.rel (%p286) target = $region12
      $region11: #{decoder_forward.7} parent=5 // pred_region
        %s290 = ssub.s32 %s20, 1
        // Predicated region
        $region13: #{decoder_forward.7} parent=11 // pred_check
          %p291 = pneg %p93
        $region14: #{decoder_forward.7} parent=11 // pred_check_branch
          %293 = sbr.rel (%p291) target = $region16
        $region15: #{decoder_forward.7} parent=11 // pred_region
          _
        $region16: #{decoder_forward.7} parent=11 // pred_fallthru
          _
        // Predicated region
        $region17: #{decoder_forward.7} parent=11 // pred_check
          %p294 = pneg %p114
        $region18: #{decoder_forward.7} parent=11 // pred_check_branch
          %296 = sbr.rel (%p294) target = $region20
        $region19: #{decoder_forward.7} parent=11 // pred_region
          _
        $region20: #{decoder_forward.7} parent=11 // pred_fallthru
          _
        // Predicated region
        $region21: #{decoder_forward.7} parent=11 // pred_check
          %p297 = pneg %p135
        $region22: #{decoder_forward.7} parent=11 // pred_check_branch
          %299 = sbr.rel (%p297) target = $region24
        $region23: #{decoder_forward.7} parent=11 // pred_region
          _
        $region24: #{decoder_forward.7} parent=11 // pred_fallthru
          _
        // Predicated region
        $region25: #{decoder_forward.7} parent=11 // pred_check
          %p300 = pneg %p156
        $region26: #{decoder_forward.7} parent=11 // pred_check_branch
          %302 = sbr.rel (%p300) target = $region28
        $region27: #{decoder_forward.7} parent=11 // pred_region
          _
        $region28: #{decoder_forward.7} parent=11 // pred_fallthru
          _
        // Predicated region
        $region29: #{decoder_forward.7} parent=11 // pred_check
          %p303 = pneg %p177
        $region30: #{decoder_forward.7} parent=11 // pred_check_branch
          %305 = sbr.rel (%p303) target = $region32
        $region31: #{decoder_forward.7} parent=11 // pred_region
          _
        $region32: #{decoder_forward.7} parent=11 // pred_fallthru
          _
        // Predicated region
        $region33: #{decoder_forward.7} parent=11 // pred_check
          %p306 = pneg %p198
        $region34: #{decoder_forward.7} parent=11 // pred_check_branch
          %308 = sbr.rel (%p306) target = $region36
        $region35: #{decoder_forward.7} parent=11 // pred_region
          _
        $region36: #{decoder_forward.7} parent=11 // pred_fallthru
          _
      $region12: #{decoder_forward.7} parent=5 // pred_fallthru
        _
      %p309 = scmp.lt.s32.totalorder %s20, 2
      // Predicated region
      $region37: #{decoder_forward.7} parent=5 // pred_check
        %p310 = pneg %p309
      $region38: #{decoder_forward.7} parent=5 // pred_check_branch
        %312 = sbr.rel (%p310) target = $region40
      $region39: #{decoder_forward.7} parent=5 // pred_region
        // Predicated region
        $region41: #{decoder_forward.7} parent=39 // pred_check
          %p313 = pneg %p40
        $region42: #{decoder_forward.7} parent=39 // pred_check_branch
          %315 = sbr.rel (%p313) target = $region44
        $region43: #{decoder_forward.7} parent=39 // pred_region
          %p316 = scmp.lt.s32.totalorder %s20, 1
          %s317 = scalar_select %p316, %s20, 1
          %s318 = smul.addr %s317, 4
          %s319 = scalar_lea.vmem %s0, %s318
        $region44: #{decoder_forward.7} parent=39 // pred_fallthru
          _
        // Predicated region
        $region45: #{decoder_forward.7} parent=39 // pred_check
          %p320 = pneg %p66
        $region46: #{decoder_forward.7} parent=39 // pred_check_branch
          %322 = sbr.rel (%p320) target = $region48
        $region47: #{decoder_forward.7} parent=39 // pred_region
          %p323 = scmp.lt.s32.totalorder %s20, 1
          %s324 = scalar_select %p323, %s20, 1
          %s325 = smul.addr %s324, 4
          %s326 = scalar_lea.vmem %s1, %s325
        $region48: #{decoder_forward.7} parent=39 // pred_fallthru
          _
        // Predicated region
        $region49: #{decoder_forward.7} parent=39 // pred_check
          %p327 = pneg %p218
        $region50: #{decoder_forward.7} parent=39 // pred_check_branch
          %329 = sbr.rel (%p327) target = $region52
        $region51: #{decoder_forward.7} parent=39 // pred_region
          %p330 = scmp.lt.s32.totalorder %s20, 1
          %s331 = scalar_select %p330, %s20, 1
          %s332 = smul.addr %s331, 8
          %s333 = scalar_lea.vmem %s8, %s332
        $region52: #{decoder_forward.7} parent=39 // pred_fallthru
          _
      $region40: #{decoder_forward.7} parent=5 // pred_fallthru
        _
      %p334 = scmp.le.s32.totalorder 1, %s20
      %p335 = scmp.lt.s32.totalorder %s20, 3
      %p336 = pnand %p334, %p335
      %p337 = pneg %p336
      // Predicated region
      $region53: #{decoder_forward.7} parent=5 // pred_check
        _
      $region54: #{decoder_forward.7} parent=5 // pred_check_branch
        %339 = sbr.rel (%p336) target = $region56
      $region55: #{decoder_forward.7} parent=5 // pred_region
        %s340 = ssub.s32 %s20, 1
        %p341 = scmp.lt.s32.totalorder %s25, 1
        %s342 = scalar_select %p341, %s25, 1
        %s343 = smul.addr %s342, 4
        %s344 = scalar_lea.vmem %s0, %s343
        %p345 = pneg %p46
        %p346 = pneg %p43
        %p347 = scmp.lt.s32.totalorder %s25, 1
        %s348 = scalar_select %p347, %s25, 1
        %s349 = smul.addr %s348, 4
        %s350 = scalar_lea.vmem %s1, %s349
        %p351 = pneg %p72
        %p352 = pneg %p69
        %p353 = pneg %p93
        %p354 = pneg %p90
        %p355 = pneg %p114
        %p356 = pneg %p111
        %p357 = pneg %p135
        %p358 = pneg %p132
        %p359 = pneg %p156
        %p360 = pneg %p153
        %p361 = pneg %p177
        %p362 = pneg %p174
        %p363 = pneg %p198
        %p364 = pneg %p195
        %p365 = scmp.lt.s32.totalorder %s25, 1
        %s366 = scalar_select %p365, %s25, 1
        %s367 = smul.addr %s366, 8
        %s368 = scalar_lea.vmem %s8, %s367
        %p369 = pneg %p224
        %p370 = pneg %p221
        %p371 = pneg %p250
        %p372 = pneg %p247
        %p373 = scmp.lt.s32.totalorder %s25, 1
        %s374 = scalar_select %p373, %s25, 1
        %s375 = smul.addr %s374, 4
        %s376 = scalar_lea.vmem %s9, %s375
        %p377 = pneg %p276
        %p378 = pneg %p273
        %s379 = sand.u32 %s263, 1
        %s380 = scalar_lea.sflag [#allocation3], %s379
        %s381 = sand.u32 %s263, 1
        %s382 = smul.addr %s381, 32
        %s383 = scalar_lea.vmem [#allocation2], %s382
        %p384 = scmp.lt.s32.totalorder %s25, 1
        %s385 = scalar_select %p384, %s25, 1
        %s386 = smul.addr %s385, 4
        %s387 = scalar_lea.vmem %s0, %s386
        %p388 = scmp.lt.s32.totalorder %s25, 1
        %s389 = scalar_select %p388, %s25, 1
        %s390 = smul.addr %s389, 4
        %s391 = scalar_lea.vmem %s1, %s390
        %p392 = scmp.lt.s32.totalorder %s25, 1
        %s393 = scalar_select %p392, %s25, 1
        %s394 = smul.addr %s393, 8
        %s395 = scalar_lea.vmem %s8, %s394
        %p396 = scmp.lt.s32.totalorder %s25, 1
        %s397 = scalar_select %p396, %s25, 1
        %s398 = smul.addr %s397, 4
        %s399 = scalar_lea.vmem %s9, %s398
        %v401 = vld [vmem:[%s387] sm:$0xf]
        %v402 = vld [vmem:[%s2] sm:$0xf]
        %v403 = vld [vmem:[%s2 + $0x4] sm:$0xf]
        %v404 = vld [vmem:[%s2 + $0x8] sm:$0xf]
        %v405 = vld [vmem:[%s2 + $0xc] sm:$0xf]
        %v406 = vld [vmem:[%s3] sm:$0x1]
        %v408 = vlaneseq
        %v409 = vshrl.u32 %v408, 7
        %v410 = vsub.s32 0, %v409
        %v411 = vrot.slane %v406, %v410
        %v417 = vunpack.c.l.b16 %v402
        %v418 = vunpack.c.l.b16 %v403
        %v419 = vunpack.c.l.b16 %v404
        %v420 = vunpack.c.l.b16 %v405
        %v421 = vpack.c.b16 %v418, %v417
        %v422 = vpack.c.b16 %v420, %v419
        %vm425 = vcmask 261120
        %v427 = vsel %vm425, %v401, 0
        %429 = vmatprep.subr.bf16.mxu0 0
        %430 = vmatpush1.bf16.msra.mxu0 0
        %431 = vmatprep.subr.bf16.mxu0 0
        %432 = vmatpush1.bf16.msra.mxu0 0
        %433 = vmatprep.subr.bf16.mxu0 0
        %434 = vmatpush1.bf16.msra.mxu0 0
        %435 = vmatprep.subr.bf16.mxu0 0
        %436 = vmatpush1.bf16.msra.mxu0 0
        %437 = vmatprep.subr.bf16.mxu0 0
        %438 = vmatpush1.bf16.msra.mxu0 0
        %439 = vmatprep.subr.bf16.mxu0 0
        %440 = vmatpush1.bf16.msra.mxu0 0
        %441 = vmatprep.subr.bf16.mxu0 0
        %442 = vmatpush1.bf16.msra.mxu0 %v422
        %443 = vmatprep.subr.bf16.mxu0 0
        %444 = vmatpush1.bf16.msra.mxu0 %v421
        %445 = vmatprep.subr.bf16.mxu0 0
        %446 = vmatpush2.bf16.msra.mxu0 0
        %447 = vmatprep.subr.bf16.mxu0 0
        %448 = vmatpush2.bf16.msra.mxu0 0
        %449 = vmatprep.subr.bf16.mxu0 0
        %450 = vmatpush2.bf16.msra.mxu0 0
        %451 = vmatprep.subr.bf16.mxu0 0
        %452 = vmatpush2.bf16.msra.mxu0 0
        %453 = vmatprep.subr.bf16.mxu0 0
        %454 = vmatpush2.bf16.msra.mxu0 0
        %455 = vmatprep.subr.bf16.mxu0 0
        %456 = vmatpush2.bf16.msra.mxu0 0
        %457 = vmatprep.subr.bf16.mxu0 0
        %458 = vmatpush2.bf16.msra.mxu0 0
        %459 = vmatprep.subr.bf16.mxu0 0
        %460 = vmatpush2.bf16.msra.mxu0 0
        %461 = vmatprep.mubr.bf16.mxu0 0
        %462 = vmatmul.mubr.bf16.gmra.mxu0 %v427
        %v463 = vpop.f32.mrf.mxu0
        %v464 = vadd.f32 %v411, %v463
        %v465 = vpop.f32.mrf.mxu0
        %v466 = vpop.f32.mrf.mxu0
        %v467 = vpop.f32.mrf.mxu0
        %468 = vdwg.mxu0
        %v469 = vmul.f32 %v464, 0.35355338
        %v470 = vld [vmem:[%s391] sm:$0xf]
        %v471 = vld [vmem:[%s4] sm:$0xf]
        %v472 = vld [vmem:[%s4 + $0x4] sm:$0xf]
        %v473 = vld [vmem:[%s4 + $0x8] sm:$0xf]
        %v474 = vld [vmem:[%s4 + $0xc] sm:$0xf]
        %v475 = vld [vmem:[%s5] sm:$0x1]
        %v477 = vlaneseq
        %v478 = vshrl.u32 %v477, 7
        %v479 = vsub.s32 0, %v478
        %v480 = vrot.slane %v475, %v479
        %v486 = vunpack.c.l.b16 %v471
        %v487 = vunpack.c.l.b16 %v472
        %v488 = vunpack.c.l.b16 %v473
        %v489 = vunpack.c.l.b16 %v474
        %v490 = vpack.c.b16 %v487, %v486
        %v491 = vpack.c.b16 %v489, %v488
        %v495 = vsel %vm425, %v470, 0
        %497 = vmatprep.subr.bf16.mxu0 0
        %498 = vmatpush1.bf16.msra.mxu0 0
        %499 = vmatprep.subr.bf16.mxu0 0
        %500 = vmatpush1.bf16.msra.mxu0 0
        %501 = vmatprep.subr.bf16.mxu0 0
        %502 = vmatpush1.bf16.msra.mxu0 0
        %503 = vmatprep.subr.bf16.mxu0 0
        %504 = vmatpush1.bf16.msra.mxu0 0
        %505 = vmatprep.subr.bf16.mxu0 0
        %506 = vmatpush1.bf16.msra.mxu0 0
        %507 = vmatprep.subr.bf16.mxu0 0
        %508 = vmatpush1.bf16.msra.mxu0 0
        %509 = vmatprep.subr.bf16.mxu0 0
        %510 = vmatpush1.bf16.msra.mxu0 %v491
        %511 = vmatprep.subr.bf16.mxu0 0
        %512 = vmatpush1.bf16.msra.mxu0 %v490
        %513 = vmatprep.subr.bf16.mxu0 0
        %514 = vmatpush2.bf16.msra.mxu0 0
        %515 = vmatprep.subr.bf16.mxu0 0
        %516 = vmatpush2.bf16.msra.mxu0 0
        %517 = vmatprep.subr.bf16.mxu0 0
        %518 = vmatpush2.bf16.msra.mxu0 0
        %519 = vmatprep.subr.bf16.mxu0 0
        %520 = vmatpush2.bf16.msra.mxu0 0
        %521 = vmatprep.subr.bf16.mxu0 0
        %522 = vmatpush2.bf16.msra.mxu0 0
        %523 = vmatprep.subr.bf16.mxu0 0
        %524 = vmatpush2.bf16.msra.mxu0 0
        %525 = vmatprep.subr.bf16.mxu0 0
        %526 = vmatpush2.bf16.msra.mxu0 0
        %527 = vmatprep.subr.bf16.mxu0 0
        %528 = vmatpush2.bf16.msra.mxu0 0
        %529 = vmatprep.mubr.bf16.mxu0 0
        %530 = vmatmul.mubr.bf16.gmra.mxu0 %v495
        %v531 = vpop.f32.mrf.mxu0
        %v532 = vadd.f32 %v480, %v531
        %v533 = vpop.f32.mrf.mxu0
        %v534 = vpop.f32.mrf.mxu0
        %v535 = vpop.f32.mrf.mxu0
        %536 = vdwg.mxu0
        %v537 = vld [vmem:[%s395] sm:$0xff]
        %vm538 = vcmp.eq.f32.partialorder %v537, 0.0
        %v539 = vpack.c.bf16 %v469, %v469
        %v540 = vpack.c.bf16 %v532, %v532
        %vm541 = vcmask 64512
        %v543 = vsel %vm541, %v539, 0
        %v546 = vsel %vm541, %v540, 0
        %548 = vmatprep.subr.bf16.mxu0 0
        %549 = vmatpush1.bf16.xpose.msra.mxu0 0
        %550 = vmatprep.subr.bf16.mxu0 0
        %551 = vmatpush1.bf16.xpose.msra.mxu0 0
        %552 = vmatprep.subr.bf16.mxu0 0
        %553 = vmatpush1.bf16.xpose.msra.mxu0 0
        %554 = vmatprep.subr.bf16.mxu0 0
        %555 = vmatpush1.bf16.xpose.msra.mxu0 0
        %556 = vmatprep.subr.bf16.mxu0 0
        %557 = vmatpush1.bf16.xpose.msra.mxu0 0
        %558 = vmatprep.subr.bf16.mxu0 0
        %559 = vmatpush1.bf16.xpose.msra.mxu0 0
        %560 = vmatprep.subr.bf16.mxu0 0
        %561 = vmatpush1.bf16.xpose.msra.mxu0 0
        %562 = vmatprep.subr.bf16.mxu0 0
        %563 = vmatpush1.bf16.xpose.msra.mxu0 %v546
        %564 = vmatprep.subr.bf16.mxu0 0
        %565 = vmatpush2.bf16.xpose.msra.mxu0 0
        %566 = vmatprep.subr.bf16.mxu0 0
        %567 = vmatpush2.bf16.xpose.msra.mxu0 0
        %568 = vmatprep.subr.bf16.mxu0 0
        %569 = vmatpush2.bf16.xpose.msra.mxu0 0
        %570 = vmatprep.subr.bf16.mxu0 0
        %571 = vmatpush2.bf16.xpose.msra.mxu0 0
        %572 = vmatprep.subr.bf16.mxu0 0
        %573 = vmatpush2.bf16.xpose.msra.mxu0 0
        %574 = vmatprep.subr.bf16.mxu0 0
        %575 = vmatpush2.bf16.xpose.msra.mxu0 0
        %576 = vmatprep.subr.bf16.mxu0 0
        %577 = vmatpush2.bf16.xpose.msra.mxu0 0
        %578 = vmatprep.subr.bf16.mxu0 0
        %579 = vmatpush2.bf16.xpose.msra.mxu0 0
        %580 = vmatprep.mubr.bf16.mxu0 0
        %581 = vmatmul.mubr.bf16.gmra.mxu0 %v543
        %v582 = vpop.f32.mrf.mxu0
        %v583 = vadd.f32 0.0, %v582
        %v584 = vpop.f32.mrf.mxu0
        %v585 = vpop.f32.mrf.mxu0
        %v586 = vpop.f32.mrf.mxu0
        %587 = vdwg.mxu0
        %v588 = vsel %vm538, -1e+09, %v583
        %v589 = vsel %vm541, %v588, -inf
        %590 = vmax.xlane.f32.xlu0 %v589
        %v591 = vpop.xlane.xlu0 %590
        %v592 = vsub.f32 %v588, %v591
        %v593 = vmul.f32 %v592, 1.442695
        %v594 = vpow.pop %v593
        %v595 = vsel %vm541, %v594, 0.0
        %596 = vadd.xlane.f32.xlu0 %v595
        %v597 = vpop.xlane.xlu0 %596
        %v598 = vrcp.pop %v597
        %v599 = vmul.f32 %v594, %v598
        %600 = vst.msk [vmem:[%s383] sm:$0xff] %vm541, %v599
        %v601 = vpack.c.bf16 %v599, %v599
        %603 = vrot.lane.b32.xlu0 %v540, 96
        %v604 = vpop.permute.xlu0 %603
        %v606 = vsel %vm541, %v601, 0
        %vm608 = vcmask 1043456
        %v610 = vsel %vm608, %v604, 0
        %612 = vmatprep.subr.bf16.mxu0 0
        %613 = vmatpush1.bf16.msra.mxu0 0
        %614 = vmatprep.subr.bf16.mxu0 0
        %615 = vmatpush1.bf16.msra.mxu0 0
        %616 = vmatprep.subr.bf16.mxu0 0
        %617 = vmatpush1.bf16.msra.mxu0 0
        %618 = vmatprep.subr.bf16.mxu0 0
        %619 = vmatpush1.bf16.msra.mxu0 0
        %620 = vmatprep.subr.bf16.mxu0 0
        %621 = vmatpush1.bf16.msra.mxu0 0
        %622 = vmatprep.subr.bf16.mxu0 0
        %623 = vmatpush1.bf16.msra.mxu0 0
        %624 = vmatprep.subr.bf16.mxu0 0
        %625 = vmatpush1.bf16.msra.mxu0 0
        %626 = vmatprep.subr.bf16.mxu0 0
        %627 = vmatpush1.bf16.msra.mxu0 %v610
        %628 = vmatprep.subr.bf16.mxu0 0
        %629 = vmatpush2.bf16.msra.mxu0 0
        %630 = vmatprep.subr.bf16.mxu0 0
        %631 = vmatpush2.bf16.msra.mxu0 0
        %632 = vmatprep.subr.bf16.mxu0 0
        %633 = vmatpush2.bf16.msra.mxu0 0
        %634 = vmatprep.subr.bf16.mxu0 0
        %635 = vmatpush2.bf16.msra.mxu0 0
        %636 = vmatprep.subr.bf16.mxu0 0
        %637 = vmatpush2.bf16.msra.mxu0 0
        %638 = vmatprep.subr.bf16.mxu0 0
        %639 = vmatpush2.bf16.msra.mxu0 0
        %640 = vmatprep.subr.bf16.mxu0 0
        %641 = vmatpush2.bf16.msra.mxu0 0
        %642 = vmatprep.subr.bf16.mxu0 0
        %643 = vmatpush2.bf16.msra.mxu0 0
        %644 = vmatprep.mubr.bf16.mxu0 0
        %645 = vmatmul.mubr.bf16.gmra.mxu0 %v606
        %v646 = vpop.f32.mrf.mxu0
        %v647 = vadd.f32 0.0, %v646
        %v648 = vpop.f32.mrf.mxu0
        %v649 = vpop.f32.mrf.mxu0
        %v650 = vpop.f32.mrf.mxu0
        %651 = vdwg.mxu0
        %v652 = vpack.c.bf16 %v647, %v647
        %v653 = vld [vmem:[%s6] sm:$0xf]
        %655 = vrot.lane.b32.xlu0 %v539, 120
        %v656 = vpop.permute.xlu0 %655
        %657 = vrot.lane.b32.xlu0 %v540, 120
        %v658 = vpop.permute.xlu0 %657
        %v660 = vsel %vm541, %v656, 0
        %v663 = vsel %vm541, %v658, 0
        %665 = vmatprep.subr.bf16.mxu0 0
        %666 = vmatpush1.bf16.xpose.msra.mxu0 0
        %667 = vmatprep.subr.bf16.mxu0 0
        %668 = vmatpush1.bf16.xpose.msra.mxu0 0
        %669 = vmatprep.subr.bf16.mxu0 0
        %670 = vmatpush1.bf16.xpose.msra.mxu0 0
        %671 = vmatprep.subr.bf16.mxu0 0
        %672 = vmatpush1.bf16.xpose.msra.mxu0 0
        %673 = vmatprep.subr.bf16.mxu0 0
        %674 = vmatpush1.bf16.xpose.msra.mxu0 0
        %675 = vmatprep.subr.bf16.mxu0 0
        %676 = vmatpush1.bf16.xpose.msra.mxu0 0
        %677 = vmatprep.subr.bf16.mxu0 0
        %678 = vmatpush1.bf16.xpose.msra.mxu0 0
        %679 = vmatprep.subr.bf16.mxu0 0
        %680 = vmatpush1.bf16.xpose.msra.mxu0 %v663
        %681 = vmatprep.subr.bf16.mxu0 0
        %682 = vmatpush2.bf16.xpose.msra.mxu0 0
        %683 = vmatprep.subr.bf16.mxu0 0
        %684 = vmatpush2.bf16.xpose.msra.mxu0 0
        %685 = vmatprep.subr.bf16.mxu0 0
        %686 = vmatpush2.bf16.xpose.msra.mxu0 0
        %687 = vmatprep.subr.bf16.mxu0 0
        %688 = vmatpush2.bf16.xpose.msra.mxu0 0
        %689 = vmatprep.subr.bf16.mxu0 0
        %690 = vmatpush2.bf16.xpose.msra.mxu0 0
        %691 = vmatprep.subr.bf16.mxu0 0
        %692 = vmatpush2.bf16.xpose.msra.mxu0 0
        %693 = vmatprep.subr.bf16.mxu0 0
        %694 = vmatpush2.bf16.xpose.msra.mxu0 0
        %695 = vmatprep.subr.bf16.mxu0 0
        %696 = vmatpush2.bf16.xpose.msra.mxu0 0
        %697 = vmatprep.mubr.bf16.mxu0 0
        %698 = vmatmul.mubr.bf16.gmra.mxu0 %v660
        %v699 = vpop.f32.mrf.mxu0
        %v700 = vadd.f32 0.0, %v699
        %v701 = vpop.f32.mrf.mxu0
        %v702 = vpop.f32.mrf.mxu0
        %v703 = vpop.f32.mrf.mxu0
        %704 = vdwg.mxu0
        %v705 = vsel %vm538, -1e+09, %v700
        %v706 = vsel %vm541, %v705, -inf
        %707 = vmax.xlane.f32.xlu0 %v706
        %v708 = vpop.xlane.xlu0 %707
        %v709 = vsub.f32 %v705, %v708
        %v710 = vmul.f32 %v709, 1.442695
        %v711 = vpow.pop %v710
        %v712 = vsel %vm541, %v711, 0.0
        %713 = vadd.xlane.f32.xlu0 %v712
        %v714 = vpop.xlane.xlu0 %713
        %v715 = vrcp.pop %v714
        %v716 = vmul.f32 %v711, %v715
        %s717 = scalar_lea.vmem %s383, 8 [#allocation2]
        %718 = vst.msk [vmem:[%s717] sm:$0xff] %vm541, %v716
        %v719 = vpack.c.bf16 %v716, %v716
        %720 = vrot.lane.b32.xlu0 %v540, 88
        %v721 = vpop.permute.xlu0 %720
        %v723 = vsel %vm541, %v719, 0
        %v726 = vsel %vm608, %v721, 0
        %728 = vmatprep.subr.bf16.mxu0 0
        %729 = vmatpush1.bf16.msra.mxu0 0
        %730 = vmatprep.subr.bf16.mxu0 0
        %731 = vmatpush1.bf16.msra.mxu0 0
        %732 = vmatprep.subr.bf16.mxu0 0
        %733 = vmatpush1.bf16.msra.mxu0 0
        %734 = vmatprep.subr.bf16.mxu0 0
        %735 = vmatpush1.bf16.msra.mxu0 0
        %736 = vmatprep.subr.bf16.mxu0 0
        %737 = vmatpush1.bf16.msra.mxu0 0
        %738 = vmatprep.subr.bf16.mxu0 0
        %739 = vmatpush1.bf16.msra.mxu0 0
        %740 = vmatprep.subr.bf16.mxu0 0
        %741 = vmatpush1.bf16.msra.mxu0 0
        %742 = vmatprep.subr.bf16.mxu0 0
        %743 = vmatpush1.bf16.msra.mxu0 %v726
        %744 = vmatprep.subr.bf16.mxu0 0
        %745 = vmatpush2.bf16.msra.mxu0 0
        %746 = vmatprep.subr.bf16.mxu0 0
        %747 = vmatpush2.bf16.msra.mxu0 0
        %748 = vmatprep.subr.bf16.mxu0 0
        %749 = vmatpush2.bf16.msra.mxu0 0
        %750 = vmatprep.subr.bf16.mxu0 0
        %751 = vmatpush2.bf16.msra.mxu0 0
        %752 = vmatprep.subr.bf16.mxu0 0
        %753 = vmatpush2.bf16.msra.mxu0 0
        %754 = vmatprep.subr.bf16.mxu0 0
        %755 = vmatpush2.bf16.msra.mxu0 0
        %756 = vmatprep.subr.bf16.mxu0 0
        %757 = vmatpush2.bf16.msra.mxu0 0
        %758 = vmatprep.subr.bf16.mxu0 0
        %759 = vmatpush2.bf16.msra.mxu0 0
        %760 = vmatprep.mubr.bf16.mxu0 0
        %761 = vmatmul.mubr.bf16.gmra.mxu0 %v723
        %v762 = vpop.f32.mrf.mxu0
        %v763 = vadd.f32 0.0, %v762
        %v764 = vpop.f32.mrf.mxu0
        %v765 = vpop.f32.mrf.mxu0
        %v766 = vpop.f32.mrf.mxu0
        %767 = vdwg.mxu0
        %v768 = vpack.c.bf16 %v763, %v763
        %v769 = vld [vmem:[%s6 + $0x4] sm:$0xf]
        %v771 = vsel %vm541, %v768, 0
        %v774 = vsel %vm608, %v769, 0
        %776 = vmatprep.subr.bf16.mxu0 0
        %777 = vmatpush1.bf16.msra.mxu0 0
        %778 = vmatprep.subr.bf16.mxu0 0
        %779 = vmatpush1.bf16.msra.mxu0 0
        %780 = vmatprep.subr.bf16.mxu0 0
        %781 = vmatpush1.bf16.msra.mxu0 0
        %782 = vmatprep.subr.bf16.mxu0 0
        %783 = vmatpush1.bf16.msra.mxu0 0
        %784 = vmatprep.subr.bf16.mxu0 0
        %785 = vmatpush1.bf16.msra.mxu0 0
        %786 = vmatprep.subr.bf16.mxu0 0
        %787 = vmatpush1.bf16.msra.mxu0 0
        %788 = vmatprep.subr.bf16.mxu0 0
        %789 = vmatpush1.bf16.msra.mxu0 0
        %790 = vmatprep.subr.bf16.mxu0 0
        %791 = vmatpush1.bf16.msra.mxu0 %v774
        %792 = vmatprep.subr.bf16.mxu0 0
        %793 = vmatpush2.bf16.msra.mxu0 0
        %794 = vmatprep.subr.bf16.mxu0 0
        %795 = vmatpush2.bf16.msra.mxu0 0
        %796 = vmatprep.subr.bf16.mxu0 0
        %797 = vmatpush2.bf16.msra.mxu0 0
        %798 = vmatprep.subr.bf16.mxu0 0
        %799 = vmatpush2.bf16.msra.mxu0 0
        %800 = vmatprep.subr.bf16.mxu0 0
        %801 = vmatpush2.bf16.msra.mxu0 0
        %802 = vmatprep.subr.bf16.mxu0 0
        %803 = vmatpush2.bf16.msra.mxu0 0
        %804 = vmatprep.subr.bf16.mxu0 0
        %805 = vmatpush2.bf16.msra.mxu0 0
        %806 = vmatprep.subr.bf16.mxu0 0
        %807 = vmatpush2.bf16.msra.mxu0 0
        %808 = vmatprep.mubr.bf16.mxu0 0
        %809 = vmatmul.mubr.bf16.gmra.mxu0 %v771
        %v810 = vpop.f32.mrf.mxu0
        %v811 = vadd.f32 0.0, %v810
        %v812 = vpop.f32.mrf.mxu0
        %v813 = vpop.f32.mrf.mxu0
        %v814 = vpop.f32.mrf.mxu0
        %815 = vdwg.mxu0
        %v817 = vsel %vm541, %v652, 0
        %v820 = vsel %vm608, %v653, 0
        %822 = vmatprep.subr.bf16.mxu0 0
        %823 = vmatpush1.bf16.msra.mxu0 0
        %824 = vmatprep.subr.bf16.mxu0 0
        %825 = vmatpush1.bf16.msra.mxu0 0
        %826 = vmatprep.subr.bf16.mxu0 0
        %827 = vmatpush1.bf16.msra.mxu0 0
        %828 = vmatprep.subr.bf16.mxu0 0
        %829 = vmatpush1.bf16.msra.mxu0 0
        %830 = vmatprep.subr.bf16.mxu0 0
        %831 = vmatpush1.bf16.msra.mxu0 0
        %832 = vmatprep.subr.bf16.mxu0 0
        %833 = vmatpush1.bf16.msra.mxu0 0
        %834 = vmatprep.subr.bf16.mxu0 0
        %835 = vmatpush1.bf16.msra.mxu0 0
        %836 = vmatprep.subr.bf16.mxu0 0
        %837 = vmatpush1.bf16.msra.mxu0 %v820
        %838 = vmatprep.subr.bf16.mxu0 0
        %839 = vmatpush2.bf16.msra.mxu0 0
        %840 = vmatprep.subr.bf16.mxu0 0
        %841 = vmatpush2.bf16.msra.mxu0 0
        %842 = vmatprep.subr.bf16.mxu0 0
        %843 = vmatpush2.bf16.msra.mxu0 0
        %844 = vmatprep.subr.bf16.mxu0 0
        %845 = vmatpush2.bf16.msra.mxu0 0
        %846 = vmatprep.subr.bf16.mxu0 0
        %847 = vmatpush2.bf16.msra.mxu0 0
        %848 = vmatprep.subr.bf16.mxu0 0
        %849 = vmatpush2.bf16.msra.mxu0 0
        %850 = vmatprep.subr.bf16.mxu0 0
        %851 = vmatpush2.bf16.msra.mxu0 0
        %852 = vmatprep.subr.bf16.mxu0 0
        %853 = vmatpush2.bf16.msra.mxu0 0
        %854 = vmatprep.mubr.bf16.mxu0 0
        %855 = vmatmul.mubr.bf16.gmra.mxu0 %v817
        %v856 = vpop.f32.mrf.mxu0
        %v857 = vadd.f32 %v811, %v856
        %v858 = vpop.f32.mrf.mxu0
        %v859 = vpop.f32.mrf.mxu0
        %v860 = vpop.f32.mrf.mxu0
        %861 = vdwg.mxu0
        %862 = vrot.lane.b32.xlu0 %v539, 112
        %v863 = vpop.permute.xlu0 %862
        %864 = vrot.lane.b32.xlu0 %v540, 112
        %v865 = vpop.permute.xlu0 %864
        %v867 = vsel %vm541, %v863, 0
        %v870 = vsel %vm541, %v865, 0
        %872 = vmatprep.subr.bf16.mxu0 0
        %873 = vmatpush1.bf16.xpose.msra.mxu0 0
        %874 = vmatprep.subr.bf16.mxu0 0
        %875 = vmatpush1.bf16.xpose.msra.mxu0 0
        %876 = vmatprep.subr.bf16.mxu0 0
        %877 = vmatpush1.bf16.xpose.msra.mxu0 0
        %878 = vmatprep.subr.bf16.mxu0 0
        %879 = vmatpush1.bf16.xpose.msra.mxu0 0
        %880 = vmatprep.subr.bf16.mxu0 0
        %881 = vmatpush1.bf16.xpose.msra.mxu0 0
        %882 = vmatprep.subr.bf16.mxu0 0
        %883 = vmatpush1.bf16.xpose.msra.mxu0 0
        %884 = vmatprep.subr.bf16.mxu0 0
        %885 = vmatpush1.bf16.xpose.msra.mxu0 0
        %886 = vmatprep.subr.bf16.mxu0 0
        %887 = vmatpush1.bf16.xpose.msra.mxu0 %v870
        %888 = vmatprep.subr.bf16.mxu0 0
        %889 = vmatpush2.bf16.xpose.msra.mxu0 0
        %890 = vmatprep.subr.bf16.mxu0 0
        %891 = vmatpush2.bf16.xpose.msra.mxu0 0
        %892 = vmatprep.subr.bf16.mxu0 0
        %893 = vmatpush2.bf16.xpose.msra.mxu0 0
        %894 = vmatprep.subr.bf16.mxu0 0
        %895 = vmatpush2.bf16.xpose.msra.mxu0 0
        %896 = vmatprep.subr.bf16.mxu0 0
        %897 = vmatpush2.bf16.xpose.msra.mxu0 0
        %898 = vmatprep.subr.bf16.mxu0 0
        %899 = vmatpush2.bf16.xpose.msra.mxu0 0
        %900 = vmatprep.subr.bf16.mxu0 0
        %901 = vmatpush2.bf16.xpose.msra.mxu0 0
        %902 = vmatprep.subr.bf16.mxu0 0
        %903 = vmatpush2.bf16.xpose.msra.mxu0 0
        %904 = vmatprep.mubr.bf16.mxu0 0
        %905 = vmatmul.mubr.bf16.gmra.mxu0 %v867
        %v906 = vpop.f32.mrf.mxu0
        %v907 = vadd.f32 0.0, %v906
        %v908 = vpop.f32.mrf.mxu0
        %v909 = vpop.f32.mrf.mxu0
        %v910 = vpop.f32.mrf.mxu0
        %911 = vdwg.mxu0
        %v912 = vsel %vm538, -1e+09, %v907
        %v913 = vsel %vm541, %v912, -inf
        %914 = vmax.xlane.f32.xlu0 %v913
        %v915 = vpop.xlane.xlu0 %914
        %v916 = vsub.f32 %v912, %v915
        %v917 = vmul.f32 %v916, 1.442695
        %v918 = vpow.pop %v917
        %v919 = vsel %vm541, %v918, 0.0
        %920 = vadd.xlane.f32.xlu0 %v919
        %v921 = vpop.xlane.xlu0 %920
        %v922 = vrcp.pop %v921
        %v923 = vmul.f32 %v918, %v922
        %s924 = scalar_lea.vmem %s383, 16 [#allocation2]
        %925 = vst.msk [vmem:[%s924] sm:$0xff] %vm541, %v923
        %v926 = vpack.c.bf16 %v923, %v923
        %927 = vrot.lane.b32.xlu0 %v540, 80
        %v928 = vpop.permute.xlu0 %927
        %v930 = vsel %vm541, %v926, 0
        %v933 = vsel %vm608, %v928, 0
        %935 = vmatprep.subr.bf16.mxu0 0
        %936 = vmatpush1.bf16.msra.mxu0 0
        %937 = vmatprep.subr.bf16.mxu0 0
        %938 = vmatpush1.bf16.msra.mxu0 0
        %939 = vmatprep.subr.bf16.mxu0 0
        %940 = vmatpush1.bf16.msra.mxu0 0
        %941 = vmatprep.subr.bf16.mxu0 0
        %942 = vmatpush1.bf16.msra.mxu0 0
        %943 = vmatprep.subr.bf16.mxu0 0
        %944 = vmatpush1.bf16.msra.mxu0 0
        %945 = vmatprep.subr.bf16.mxu0 0
        %946 = vmatpush1.bf16.msra.mxu0 0
        %947 = vmatprep.subr.bf16.mxu0 0
        %948 = vmatpush1.bf16.msra.mxu0 0
        %949 = vmatprep.subr.bf16.mxu0 0
        %950 = vmatpush1.bf16.msra.mxu0 %v933
        %951 = vmatprep.subr.bf16.mxu0 0
        %952 = vmatpush2.bf16.msra.mxu0 0
        %953 = vmatprep.subr.bf16.mxu0 0
        %954 = vmatpush2.bf16.msra.mxu0 0
        %955 = vmatprep.subr.bf16.mxu0 0
        %956 = vmatpush2.bf16.msra.mxu0 0
        %957 = vmatprep.subr.bf16.mxu0 0
        %958 = vmatpush2.bf16.msra.mxu0 0
        %959 = vmatprep.subr.bf16.mxu0 0
        %960 = vmatpush2.bf16.msra.mxu0 0
        %961 = vmatprep.subr.bf16.mxu0 0
        %962 = vmatpush2.bf16.msra.mxu0 0
        %963 = vmatprep.subr.bf16.mxu0 0
        %964 = vmatpush2.bf16.msra.mxu0 0
        %965 = vmatprep.subr.bf16.mxu0 0
        %966 = vmatpush2.bf16.msra.mxu0 0
        %967 = vmatprep.mubr.bf16.mxu0 0
        %968 = vmatmul.mubr.bf16.gmra.mxu0 %v930
        %v969 = vpop.f32.mrf.mxu0
        %v970 = vadd.f32 0.0, %v969
        %v971 = vpop.f32.mrf.mxu0
        %v972 = vpop.f32.mrf.mxu0
        %v973 = vpop.f32.mrf.mxu0
        %974 = vdwg.mxu0
        %v975 = vpack.c.bf16 %v970, %v970
        %v976 = vld [vmem:[%s6 + $0x8] sm:$0xf]
        %v978 = vsel %vm541, %v975, 0
        %v981 = vsel %vm608, %v976, 0
        %983 = vmatprep.subr.bf16.mxu0 0
        %984 = vmatpush1.bf16.msra.mxu0 0
        %985 = vmatprep.subr.bf16.mxu0 0
        %986 = vmatpush1.bf16.msra.mxu0 0
        %987 = vmatprep.subr.bf16.mxu0 0
        %988 = vmatpush1.bf16.msra.mxu0 0
        %989 = vmatprep.subr.bf16.mxu0 0
        %990 = vmatpush1.bf16.msra.mxu0 0
        %991 = vmatprep.subr.bf16.mxu0 0
        %992 = vmatpush1.bf16.msra.mxu0 0
        %993 = vmatprep.subr.bf16.mxu0 0
        %994 = vmatpush1.bf16.msra.mxu0 0
        %995 = vmatprep.subr.bf16.mxu0 0
        %996 = vmatpush1.bf16.msra.mxu0 0
        %997 = vmatprep.subr.bf16.mxu0 0
        %998 = vmatpush1.bf16.msra.mxu0 %v981
        %999 = vmatprep.subr.bf16.mxu0 0
        %1000 = vmatpush2.bf16.msra.mxu0 0
        %1001 = vmatprep.subr.bf16.mxu0 0
        %1002 = vmatpush2.bf16.msra.mxu0 0
        %1003 = vmatprep.subr.bf16.mxu0 0
        %1004 = vmatpush2.bf16.msra.mxu0 0
        %1005 = vmatprep.subr.bf16.mxu0 0
        %1006 = vmatpush2.bf16.msra.mxu0 0
        %1007 = vmatprep.subr.bf16.mxu0 0
        %1008 = vmatpush2.bf16.msra.mxu0 0
        %1009 = vmatprep.subr.bf16.mxu0 0
        %1010 = vmatpush2.bf16.msra.mxu0 0
        %1011 = vmatprep.subr.bf16.mxu0 0
        %1012 = vmatpush2.bf16.msra.mxu0 0
        %1013 = vmatprep.subr.bf16.mxu0 0
        %1014 = vmatpush2.bf16.msra.mxu0 0
        %1015 = vmatprep.mubr.bf16.mxu0 0
        %1016 = vmatmul.mubr.bf16.gmra.mxu0 %v978
        %v1017 = vpop.f32.mrf.mxu0
        %v1018 = vadd.f32 0.0, %v1017
        %v1019 = vpop.f32.mrf.mxu0
        %v1020 = vpop.f32.mrf.mxu0
        %v1021 = vpop.f32.mrf.mxu0
        %1022 = vdwg.mxu0
        %v1023 = vadd.f32 %v857, %v1018
        %1024 = vrot.lane.b32.xlu0 %v539, 104
        %v1025 = vpop.permute.xlu0 %1024
        %1026 = vrot.lane.b32.xlu0 %v540, 104
        %v1027 = vpop.permute.xlu0 %1026
        %v1029 = vsel %vm541, %v1025, 0
        %v1032 = vsel %vm541, %v1027, 0
        %1034 = vmatprep.subr.bf16.mxu0 0
        %1035 = vmatpush1.bf16.xpose.msra.mxu0 0
        %1036 = vmatprep.subr.bf16.mxu0 0
        %1037 = vmatpush1.bf16.xpose.msra.mxu0 0
        %1038 = vmatprep.subr.bf16.mxu0 0
        %1039 = vmatpush1.bf16.xpose.msra.mxu0 0
        %1040 = vmatprep.subr.bf16.mxu0 0
        %1041 = vmatpush1.bf16.xpose.msra.mxu0 0
        %1042 = vmatprep.subr.bf16.mxu0 0
        %1043 = vmatpush1.bf16.xpose.msra.mxu0 0
        %1044 = vmatprep.subr.bf16.mxu0 0
        %1045 = vmatpush1.bf16.xpose.msra.mxu0 0
        %1046 = vmatprep.subr.bf16.mxu0 0
        %1047 = vmatpush1.bf16.xpose.msra.mxu0 0
        %1048 = vmatprep.subr.bf16.mxu0 0
        %1049 = vmatpush1.bf16.xpose.msra.mxu0 %v1032
        %1050 = vmatprep.subr.bf16.mxu0 0
        %1051 = vmatpush2.bf16.xpose.msra.mxu0 0
        %1052 = vmatprep.subr.bf16.mxu0 0
        %1053 = vmatpush2.bf16.xpose.msra.mxu0 0
        %1054 = vmatprep.subr.bf16.mxu0 0
        %1055 = vmatpush2.bf16.xpose.msra.mxu0 0
        %1056 = vmatprep.subr.bf16.mxu0 0
        %1057 = vmatpush2.bf16.xpose.msra.mxu0 0
        %1058 = vmatprep.subr.bf16.mxu0 0
        %1059 = vmatpush2.bf16.xpose.msra.mxu0 0
        %1060 = vmatprep.subr.bf16.mxu0 0
        %1061 = vmatpush2.bf16.xpose.msra.mxu0 0
        %1062 = vmatprep.subr.bf16.mxu0 0
        %1063 = vmatpush2.bf16.xpose.msra.mxu0 0
        %1064 = vmatprep.subr.bf16.mxu0 0
        %1065 = vmatpush2.bf16.xpose.msra.mxu0 0
        %1066 = vmatprep.mubr.bf16.mxu0 0
        %1067 = vmatmul.mubr.bf16.gmra.mxu0 %v1029
        %v1068 = vpop.f32.mrf.mxu0
        %v1069 = vadd.f32 0.0, %v1068
        %v1070 = vpop.f32.mrf.mxu0
        %v1071 = vpop.f32.mrf.mxu0
        %v1072 = vpop.f32.mrf.mxu0
        %1073 = vdwg.mxu0
        %v1074 = vsel %vm538, -1e+09, %v1069
        %v1075 = vsel %vm541, %v1074, -inf
        %1076 = vmax.xlane.f32.xlu0 %v1075
        %v1077 = vpop.xlane.xlu0 %1076
        %v1078 = vsub.f32 %v1074, %v1077
        %v1079 = vmul.f32 %v1078, 1.442695
        %v1080 = vpow.pop %v1079
        %v1081 = vsel %vm541, %v1080, 0.0
        %1082 = vadd.xlane.f32.xlu0 %v1081
        %v1083 = vpop.xlane.xlu0 %1082
        %v1084 = vrcp.pop %v1083
        %v1085 = vmul.f32 %v1080, %v1084
        %s1086 = scalar_lea.vmem %s383, 24 [#allocation2]
        %1087 = vst.msk [vmem:[%s1086] sm:$0xff] %vm541, %v1085
        %v1088 = vpack.c.bf16 %v1085, %v1085
        %1089 = vrot.lane.b32.xlu0 %v540, 72
        %v1090 = vpop.permute.xlu0 %1089
        %v1092 = vsel %vm541, %v1088, 0
        %v1095 = vsel %vm608, %v1090, 0
        %1097 = vmatprep.subr.bf16.mxu0 0
        %1098 = vmatpush1.bf16.msra.mxu0 0
        %1099 = vmatprep.subr.bf16.mxu0 0
        %1100 = vmatpush1.bf16.msra.mxu0 0
        %1101 = vmatprep.subr.bf16.mxu0 0
        %1102 = vmatpush1.bf16.msra.mxu0 0
        %1103 = vmatprep.subr.bf16.mxu0 0
        %1104 = vmatpush1.bf16.msra.mxu0 0
        %1105 = vmatprep.subr.bf16.mxu0 0
        %1106 = vmatpush1.bf16.msra.mxu0 0
        %1107 = vmatprep.subr.bf16.mxu0 0
        %1108 = vmatpush1.bf16.msra.mxu0 0
        %1109 = vmatprep.subr.bf16.mxu0 0
        %1110 = vmatpush1.bf16.msra.mxu0 0
        %1111 = vmatprep.subr.bf16.mxu0 0
        %1112 = vmatpush1.bf16.msra.mxu0 %v1095
        %1113 = vmatprep.subr.bf16.mxu0 0
        %1114 = vmatpush2.bf16.msra.mxu0 0
        %1115 = vmatprep.subr.bf16.mxu0 0
        %1116 = vmatpush2.bf16.msra.mxu0 0
        %1117 = vmatprep.subr.bf16.mxu0 0
        %1118 = vmatpush2.bf16.msra.mxu0 0
        %1119 = vmatprep.subr.bf16.mxu0 0
        %1120 = vmatpush2.bf16.msra.mxu0 0
        %1121 = vmatprep.subr.bf16.mxu0 0
        %1122 = vmatpush2.bf16.msra.mxu0 0
        %1123 = vmatprep.subr.bf16.mxu0 0
        %1124 = vmatpush2.bf16.msra.mxu0 0
        %1125 = vmatprep.subr.bf16.mxu0 0
        %1126 = vmatpush2.bf16.msra.mxu0 0
        %1127 = vmatprep.subr.bf16.mxu0 0
        %1128 = vmatpush2.bf16.msra.mxu0 0
        %1129 = vmatprep.mubr.bf16.mxu0 0
        %1130 = vmatmul.mubr.bf16.gmra.mxu0 %v1092
        %v1131 = vpop.f32.mrf.mxu0
        %v1132 = vadd.f32 0.0, %v1131
        %v1133 = vpop.f32.mrf.mxu0
        %v1134 = vpop.f32.mrf.mxu0
        %v1135 = vpop.f32.mrf.mxu0
        %1136 = vdwg.mxu0
        %v1137 = vpack.c.bf16 %v1132, %v1132
        %v1138 = vld [vmem:[%s6 + $0xc] sm:$0xf]
        %v1140 = vsel %vm541, %v1137, 0
        %v1143 = vsel %vm608, %v1138, 0
        %1145 = vmatprep.subr.bf16.mxu0 0
        %1146 = vmatpush1.bf16.msra.mxu0 0
        %1147 = vmatprep.subr.bf16.mxu0 0
        %1148 = vmatpush1.bf16.msra.mxu0 0
        %1149 = vmatprep.subr.bf16.mxu0 0
        %1150 = vmatpush1.bf16.msra.mxu0 0
        %1151 = vmatprep.subr.bf16.mxu0 0
        %1152 = vmatpush1.bf16.msra.mxu0 0
        %1153 = vmatprep.subr.bf16.mxu0 0
        %1154 = vmatpush1.bf16.msra.mxu0 0
        %1155 = vmatprep.subr.bf16.mxu0 0
        %1156 = vmatpush1.bf16.msra.mxu0 0
        %1157 = vmatprep.subr.bf16.mxu0 0
        %1158 = vmatpush1.bf16.msra.mxu0 0
        %1159 = vmatprep.subr.bf16.mxu0 0
        %1160 = vmatpush1.bf16.msra.mxu0 %v1143
        %1161 = vmatprep.subr.bf16.mxu0 0
        %1162 = vmatpush2.bf16.msra.mxu0 0
        %1163 = vmatprep.subr.bf16.mxu0 0
        %1164 = vmatpush2.bf16.msra.mxu0 0
        %1165 = vmatprep.subr.bf16.mxu0 0
        %1166 = vmatpush2.bf16.msra.mxu0 0
        %1167 = vmatprep.subr.bf16.mxu0 0
        %1168 = vmatpush2.bf16.msra.mxu0 0
        %1169 = vmatprep.subr.bf16.mxu0 0
        %1170 = vmatpush2.bf16.msra.mxu0 0
        %1171 = vmatprep.subr.bf16.mxu0 0
        %1172 = vmatpush2.bf16.msra.mxu0 0
        %1173 = vmatprep.subr.bf16.mxu0 0
        %1174 = vmatpush2.bf16.msra.mxu0 0
        %1175 = vmatprep.subr.bf16.mxu0 0
        %1176 = vmatpush2.bf16.msra.mxu0 0
        %1177 = vmatprep.mubr.bf16.mxu0 0
        %1178 = vmatmul.mubr.bf16.gmra.mxu0 %v1140
        %v1179 = vpop.f32.mrf.mxu0
        %v1180 = vadd.f32 0.0, %v1179
        %v1181 = vpop.f32.mrf.mxu0
        %v1182 = vpop.f32.mrf.mxu0
        %v1183 = vpop.f32.mrf.mxu0
        %1184 = vdwg.mxu0
        %v1185 = vadd.f32 %v1023, %v1180
        %v1186 = vld [vmem:[%s7] sm:$0x1]
        %v1188 = vlaneseq
        %v1189 = vshrl.u32 %v1188, 7
        %v1190 = vsub.s32 0, %v1189
        %v1191 = vrot.slane %v1186, %v1190
        %v1193 = vadd.f32 %v1185, %v1191
        %v1194 = vpack.c.bf16 %v1193, %v1193
        %vm1195 = vcmask 257024
        %1196 = vst.msk [vmem:[%s399] sm:$0xf] %vm1195, %v1194
        %p1197 = scmp.lt.s32.totalorder %s25, 1
        %s1198 = scalar_select %p1197, %s25, 1
        %s1199 = smul.addr %s1198, 4
        %s1200 = scalar_lea.vmem %s9, %s1199
        %s1201 = sand.u32 %s263, 1
        %s1202 = scalar_lea.sflag [#allocation3], %s1201
        %s1203 = sand.u32 %s263, 1
        %s1204 = smul.addr %s1203, 32
        %s1205 = scalar_lea.vmem [#allocation2], %s1204
        // Predicated region
        $region57: #{decoder_forward.7} parent=55 // pred_check
          %p1206 = pneg %p247
        $region58: #{decoder_forward.7} parent=55 // pred_check_branch
          %1208 = sbr.rel (%p1206) target = $region60
        $region59: #{decoder_forward.7} parent=55 // pred_region
          _
        $region60: #{decoder_forward.7} parent=55 // pred_fallthru
          _
        // Predicated region
        $region61: #{decoder_forward.7} parent=55 // pred_check
          %p1209 = pneg %p273
        $region62: #{decoder_forward.7} parent=55 // pred_check_branch
          %1211 = sbr.rel (%p1209) target = $region64
        $region63: #{decoder_forward.7} parent=55 // pred_region
          %s1213 = ssub.s32 512, 512
          %1214 = vsyncadd %s1202, %s1213
          %s1215 = smul.addr %s25, 4
          %s1216 = smul.addr %s1215, 128
          %s1217 = scalar_lea.hbm %s10, %s1216
          %s1218 = sshll.u32 %s1205, 4
          %s1219 = int_to_ptr.vmem [resolvable:$true] %s1218
          %1224 = dma.vmem_to_hbm [thread:$0]  %s1219, 512, %s1217, %s1202, 128, 128, 8
        $region64: #{decoder_forward.7} parent=55 // pred_fallthru
          _
      $region56: #{decoder_forward.7} parent=5 // pred_fallthru
        _
      %p1225 = scmp.le.s32.totalorder 2, %s20
      // Predicated region
      $region65: #{decoder_forward.7} parent=5 // pred_check
        %p1226 = pneg %p1225
      $region66: #{decoder_forward.7} parent=5 // pred_check_branch
        %1228 = sbr.rel (%p1226) target = $region68
      $region67: #{decoder_forward.7} parent=5 // pred_region
        %s1229 = ssub.s32 %s20, 2
        // Predicated region
        $region69: #{decoder_forward.7} parent=67 // pred_check
          %p1230 = pneg %p253
        $region70: #{decoder_forward.7} parent=67 // pred_check_branch
          %1232 = sbr.rel (%p1230) target = $region72
        $region71: #{decoder_forward.7} parent=67 // pred_region
          %p1233 = scmp.lt.s32.totalorder %s26, 1
          %s1234 = scalar_select %p1233, %s26, 1
          %s1235 = smul.addr %s1234, 4
          %s1236 = scalar_lea.vmem %s9, %s1235
        $region72: #{decoder_forward.7} parent=67 // pred_fallthru
          _
        // Predicated region
        $region73: #{decoder_forward.7} parent=67 // pred_check
          %p1237 = pneg %p279
        $region74: #{decoder_forward.7} parent=67 // pred_check_branch
          %1239 = sbr.rel (%p1237) target = $region76
        $region75: #{decoder_forward.7} parent=67 // pred_region
          %s1240 = sand.u32 %s264, 1
          %s1241 = scalar_lea.sflag [#allocation3], %s1240
          %s1242 = sand.u32 %s264, 1
          %s1243 = smul.addr %s1242, 32
          %s1244 = scalar_lea.vmem [#allocation2], %s1243
          %1245 = dma.done %s1241, 512
        $region76: #{decoder_forward.7} parent=67 // pred_fallthru
          _
      $region68: #{decoder_forward.7} parent=5 // pred_fallthru
        _
    $region6: #{decoder_forward.7} parent=1 // loop_footer
      %s24 = sadd.s32 1, %s20
    $region7: #{decoder_forward.7} parent=1 // loop_footer_branch
      %19 = sbr.rel target = $region3
    $region8: #{decoder_forward.7} parent=1 // loop_exit
      _
    %1246 = vsyncpa [#allocation3], 1
    %s1247 = scalar_lea.sflag [#allocation3], 1
    %1248 = vsyncpa %s1247, 1

</llo_original>
